<compile_context>
chip_gen: v7x
topology: tpu7x:2x2x1
jax: 0.10.0
libtpu: 0.0.40
codegen_flags: <defaults>
</compile_context>

<pallas_src>
import functools

import jax
import jax.numpy as jnp
from jax import lax
from jax.experimental import pallas as pl
from jax.experimental.pallas import tpu as pltpu


# Rows of the packed "small params" slab (see init_params): one (depth, 8, K)
# f32 array instead of six tiny per-layer inputs -> fewer DMAs per grid step.
_ROW_BO, _ROW_LN1W, _ROW_LN1B, _ROW_LN2W, _ROW_LN2B, _ROW_B2 = range(6)
_SMALL_ROWS = 8  # padded to a full 8-sublane tile

_BLOCK_PARAM_NAMES = ("wqkv", "wo", "small", "w1", "b1", "w2")


# ----------------------------- kernel ---------------------------------------


def _layernorm(x, w, b, eps=1e-5):
    mu = jnp.mean(x, axis=-1, keepdims=True)
    var = jnp.mean((x - mu) ** 2, axis=-1, keepdims=True)
    return (x - mu) * lax.rsqrt(var + eps) * w + b


def stack_kernel(x_ref, wqkv_ref, wo_ref, small_ref, w1_ref, b1_ref, w2_ref,
                 out_ref, h_ref, *, heads, q_tile, causal, approx_recip):
    """Whole transformer stack for one batch tile.

    grid = (B // batch_tile, depth).  The depth axis is "arbitrary": the
    residual stream is carried in the VMEM scratch `h_ref`, initialized from x
    at layer 0 and written (as log_softmax) to out_ref at the last layer.
    Queries / FF rows are processed in q_tile-sized tiles so the score block is
    (heads, q_tile, T) and the FF intermediate is (batch_tile*q_tile, 4K).
    """
    layer = pl.program_id(1)
    n_layers = pl.num_programs(1)

    @pl.when(layer == 0)
    def _():
        h_ref[...] = x_ref[...].astype(jnp.float32)

    Bt, T, K = h_ref.shape
    hd = K // heads
    num_qt = T // q_tile

    wqkv = wqkv_ref[0]                       # (K, 3K) bf16; Q scale folded at init
    wq, wkv = wqkv[:, :K], wqkv[:, K:]
    wo = wo_ref[0]                           # (K, K)   bf16
    w1 = w1_ref[0]                           # (K, 4K)  bf16
    w2 = w2_ref[0]                           # (4K, K)  bf16
    b1 = b1_ref[0]                           # (1, 4K)  f32
    small = small_ref[0]                     # (8, K)   f32
    bo = small[_ROW_BO:_ROW_BO + 1, :]
    ln1w = small[_ROW_LN1W:_ROW_LN1W + 1, :]
    ln1b = small[_ROW_LN1B:_ROW_LN1B + 1, :]
    ln2w = small[_ROW_LN2W:_ROW_LN2W + 1, :]
    ln2b = small[_ROW_LN2B:_ROW_LN2B + 1, :]
    b2 = small[_ROW_B2:_ROW_B2 + 1, :]

    def _to_heads(m2d, rows):                # (Bt*rows, K) -> (Bt*heads, rows, hd)
        m = m2d.reshape(Bt, rows, heads, hd)
        m = pltpu.einshape("brhd->bhrd", m)  # heads to front, one layout-aware move
        return m.reshape(Bt * heads, rows, hd)

    # --- K / V for the whole batch tile & sequence (needed by every q tile). --
    x_lp = h_ref[...].reshape(Bt * T, K).astype(jnp.bfloat16)
    kv = jnp.dot(x_lp, wkv, preferred_element_type=jnp.float32).astype(jnp.bfloat16)
    k_bh = _to_heads(kv[:, :K], T)           # (Bt*heads, T, hd) bf16
    v_bh = _to_heads(kv[:, K:], T)

    def _tile(qt):
        row0 = qt * q_tile
        if not isinstance(row0, int):
            row0 = pl.multiple_of(row0, q_tile)

        x_t = h_ref[:, pl.ds(row0, q_tile), :].reshape(Bt * q_tile, K)   # f32
        x_t_lp = x_t.astype(jnp.bfloat16)

        # Q projection for this tile (1/sqrt(head_dim) folded into wq at init).
        q2 = jnp.dot(x_t_lp, wq, preferred_element_type=jnp.float32)
        q_bh = _to_heads(q2.astype(jnp.bfloat16), q_tile)     # (Bt*h, tq, hd)

        s = jnp.einsum("bqd,bkd->bqk", q_bh, k_bh,
                       preferred_element_type=jnp.float32)    # (Bt*h, tq, T)
        if causal:
            qpos = row0 + lax.broadcasted_iota(jnp.int32, (q_tile, T), 0)
            kpos = lax.broadcasted_iota(jnp.int32, (q_tile, T), 1)
            s = jnp.where((qpos >= kpos)[None, :, :], s, -1e30)
        s = s - jnp.max(s, axis=-1, keepdims=True)
        p = jnp.exp(s)
        denom = jnp.sum(p, axis=-1, keepdims=True)
        if approx_recip:
            p = p * pl.reciprocal(denom, approx=True)   # EUP slot, ~1e-3 rel err
        else:
            p = p / denom
        o = jnp.einsum("bqk,bkd->bqd", p.astype(jnp.bfloat16), v_bh,
                       preferred_element_type=jnp.float32)    # (Bt*h, tq, hd)

        # merge heads back to (Bt*tq, K) with one permutation (no per-head concat)
        o = pltpu.einshape("bhrd->brhd", o.reshape(Bt, heads, q_tile, hd))
        o = o.reshape(Bt * q_tile, K)

        att = jnp.dot(o.astype(jnp.bfloat16), wo,
                      preferred_element_type=jnp.float32) + bo
        x1 = _layernorm(att + x_t, ln1w, ln1b)

        h1 = jnp.dot(x1.astype(jnp.bfloat16), w1,
                     preferred_element_type=jnp.float32) + b1
        h1 = jnp.maximum(h1, 0.0)
        ff = jnp.dot(h1.astype(jnp.bfloat16), w2,
                     preferred_element_type=jnp.float32) + b2
        x2 = _layernorm(ff + x1, ln2w, ln2b)

        h_ref[:, pl.ds(row0, q_tile), :] = x2.reshape(Bt, q_tile, K)

    if num_qt == 1:
        _tile(0)
    else:
        @pl.loop(0, num_qt)
        def _(qt):
            _tile(qt)

    @pl.when(layer == n_layers - 1)
    def _():
        # Reference returns F.log_softmax(x, dim=2) of the block-stack output;
        # the dead to_probs projection is never computed (wasted MXU + HBM).
        y = h_ref[...]
        z = y - jnp.max(y, axis=-1, keepdims=True)
        lse = jnp.log(jnp.sum(jnp.exp(z), axis=-1, keepdims=True))
        out_ref[...] = z - lse


# ----------------------------- tiling heuristics ------------------------------


def _largest_divisor_leq(n, cap):
    for d in range(min(n, cap), 0, -1):
        if n % d == 0:
            return d
    return 1


def _vmem_estimate(batch_tile, T, K, heads, q_tile):
    """Rough per-grid-step VMEM working-set estimate (bytes)."""
    f32, bf16 = 4, 2
    act = batch_tile * T * K * f32                                  # in/out block
    scratch = batch_tile * T * K * f32                              # residual
    weights = (3 * K * K + K * K + 4 * K * K + 4 * K * K) * bf16 \
        + (_SMALL_ROWS * K + 4 * K) * f32
    kv = 2 * batch_tile * T * K * (f32 + bf16)                      # KV proj + bf16
    scores = 2 * batch_tile * heads * q_tile * T * f32              # s and p
    ff = batch_tile * q_tile * 4 * K * (f32 + bf16)                 # h1
    misc = 4 * batch_tile * q_tile * K * f32                        # q/o/x1/x2 tiles
    # input/output blocks and weights are double-buffered by the pipeline
    return 2 * (2 * act + weights) + scratch + kv + scores + ff + misc


def _choose_batch_tile(B, T, K, heads, q_tile, vmem_cap):
    # Keep >= 2 steps on the "parallel" batch axis when B > 1 (both v7x
    # TensorCores get work) while amortizing the per-layer weight DMA over
    # batch_tile rows; shrink further if the working set would not fit VMEM.
    upper = B if B == 1 else max(1, B // 2)
    for bt in range(upper, 0, -1):
        if B % bt == 0 and _vmem_estimate(bt, T, K, heads, q_tile) <= 0.7 * vmem_cap:
            return bt
    return 1


# ----------------------------- wrapper ---------------------------------------


def gtransformer_stack(x, blocks, heads, *, causal=True, batch_tile=None,
                       q_tile=None, approx_reciprocal=True):
    B, T, K = x.shape
    depth = blocks["wqkv"].shape[0]
    assert K % heads == 0

    try:
        vmem_cap = int(pltpu.get_tpu_info().vmem_capacity_bytes)
    except Exception:
        vmem_cap = 64 * 1024 * 1024          # conservative (v7x-sized) fallback

    if q_tile is None:
        # 256-aligned M tile for the v6e/v7x 256x256 MXU (also 128-aligned for
        # v5e); fall back to the full T when it would not stay 8-row aligned.
        q_tile = _largest_divisor_leq(T, 256)
        if q_tile % 8 != 0:
            q_tile = T
    assert T % q_tile == 0

    if batch_tile is None:
        batch_tile = _choose_batch_tile(B, T, K, heads, q_tile, vmem_cap)
    assert B % batch_tile == 0

    est = _vmem_estimate(batch_tile, T, K, heads, q_tile)
    vmem_limit = int(min(0.85 * vmem_cap, max(32 * 1024 * 1024, 1.3 * est)))

    # Single-buffer the two big FF weight slabs when double-buffering them would
    # blow the (v7x-sized) VMEM budget; otherwise keep default double-buffering.
    ffw_bytes_2buf = 2 * 2 * (4 * K * K * 2)          # w1 + w2, bf16, 2 buffers
    ff_single = ffw_bytes_2buf > 0.35 * vmem_cap
    single = {"w1": ff_single, "w2": ff_single}

    act_map = lambda b, l: (b, 0, 0)      # same activation block across layers
    wgt_map = lambda b, l: (l, 0, 0)      # pick layer l's weight slab

    def wspec(arr, single_buf):
        shape = (1,) + arr.shape[1:]
        if single_buf:
            return pl.BlockSpec(shape, wgt_map, pipeline_mode=pl.Buffered(1))
        return pl.BlockSpec(shape, wgt_map)

    in_specs = [pl.BlockSpec((batch_tile, T, K), act_map)] + [
        wspec(blocks[name], single.get(name, False)) for name in _BLOCK_PARAM_NAMES
    ]
    stacked = tuple(blocks[name] for name in _BLOCK_PARAM_NAMES)

    kernel = functools.partial(stack_kernel, heads=heads, q_tile=q_tile,
                               causal=causal, approx_recip=approx_reciprocal)

    return pl.pallas_call(
        kernel,
        out_shape=jax.ShapeDtypeStruct((B, T, K), jnp.float32),
        grid_spec=pltpu.PrefetchScalarGridSpec(
            num_scalar_prefetch=0,
            grid=(B // batch_tile, depth),
            in_specs=in_specs,
            out_specs=pl.BlockSpec((batch_tile, T, K), act_map),
            scratch_shapes=[pltpu.VMEM((batch_tile, T, K), jnp.float32)],
        ),
        compiler_params=pltpu.CompilerParams(
            dimension_semantics=("parallel", "arbitrary"),
            vmem_limit_bytes=vmem_limit,
        ),
    )(x, *stacked)


def init_params(key, k, heads, depth, seq_length, num_tokens):
    hd = k // heads

    def nrm(key, shape, scale=0.02, dtype=jnp.float32):
        return (scale * jax.random.normal(key, shape, jnp.float32)).astype(dtype)

    keys = jax.random.split(key, 7)

    # Fold the 1/sqrt(head_dim) attention scale into the Q columns of wqkv
    # (free, one-time at init; removes a (T, K) VPU multiply per layer).
    # TODO(synk): Bloem's SelfAttention scales q and k each by k**-0.25
    # (equivalent in exact arithmetic); convention assumed.
    wqkv = nrm(keys[3], (depth, k, 3 * k))
    wqkv = wqkv.at[:, :, :k].multiply(1.0 / (hd ** 0.5)).astype(jnp.bfloat16)

    zeros_k = jnp.zeros((depth, k), jnp.float32)
    ones_k = jnp.ones((depth, k), jnp.float32)
    # packed small-parameter slab: rows = [bo, ln1w, ln1b, ln2w, ln2b, b2, pad, pad]
    small = jnp.stack([zeros_k, ones_k, zeros_k, ones_k, zeros_k, zeros_k,
                       zeros_k, zeros_k], axis=1)            # (depth, 8, k)

    return {
        "token_emb": nrm(keys[0], (num_tokens, k), 1.0),
        "pos_emb": nrm(keys[1], (seq_length, k), 1.0),
        # Kept for module parity; the projection result is dead in the reference
        # forward, so it is never computed on-device.
        "to_probs_w": nrm(keys[2], (k, num_tokens)),
        "to_probs_b": jnp.zeros((1, num_tokens), jnp.float32),
        "blocks": {
            # matmul weights in bf16 (MXU-native); biases / LN params in f32.
            "wqkv": wqkv,                                        # (depth, K, 3K)
            "wo": nrm(keys[4], (depth, k, k), dtype=jnp.bfloat16),
            "small": small,                                      # (depth, 8, K)
            "w1": nrm(keys[5], (depth, k, 4 * k), dtype=jnp.bfloat16),
            "b1": jnp.zeros((depth, 1, 4 * k), jnp.float32),
            "w2": nrm(keys[6], (depth, 4 * k, k), dtype=jnp.bfloat16),
        },
    }


def gtransformer_forward(token_ids, params, heads, **stack_kwargs):
    # Embedding lookups (gathers) are glue, done in plain JAX.
    tokens = jnp.take(params["token_emb"], token_ids, axis=0)       # (B, T, K)
    T = tokens.shape[1]
    x = tokens + params["pos_emb"][:T][None, :, :]
    return gtransformer_stack(x, params["blocks"], heads, **stack_kwargs)


# ----------------------------- main ------------------------------------------

if __name__ == "__main__":
    k, heads, depth, seq_length, num_tokens = 32, 4, 2, 16, 16
    batch = 2

    key = jax.random.PRNGKey(0)
    pkey, xkey = jax.random.split(key)
    params = init_params(pkey, k, heads, depth, seq_length, num_tokens)

    token_ids = jax.random.randint(xkey, (batch, seq_length), 0, num_tokens,
                                   dtype=jnp.int32)

    # Default tiling (heuristic batch tile, single query tile at this toy T).
    out = gtransformer_forward(token_ids, params, heads)
    out = jax.block_until_ready(out)

    assert out.shape == (batch, seq_length, k)
    assert bool(jnp.all(jnp.isfinite(out)))
    # rows of a log_softmax must exp-sum to 1
    assert bool(jnp.allclose(jnp.sum(jnp.exp(out), axis=-1), 1.0, atol=1e-4))

    # Also exercise the multi-row batch tile and the in-kernel query-tile loop,
    # and check consistency with the default configuration.
    out2 = gtransformer_forward(token_ids, params, heads,
                                batch_tile=batch, q_tile=8)
    out2 = jax.block_until_ready(out2)
    assert out2.shape == out.shape
    assert bool(jnp.allclose(out, out2, atol=1e-4, rtol=1e-4))

    print("KERNEL_OK")
</pallas_src>

<mosaic_0001>
module attributes {stable_mosaic.version = 11 : i64} {
  func.func @stack_kernel(%arg0: i32, %arg1: i32, %arg2: memref<1x16x32xf32, #tpu.memory_space<vmem>>, %arg3: memref<1x32x96xbf16, #tpu.memory_space<vmem>>, %arg4: memref<1x32x32xbf16, #tpu.memory_space<vmem>>, %arg5: memref<1x8x32xf32, #tpu.memory_space<vmem>>, %arg6: memref<1x32x128xbf16, #tpu.memory_space<vmem>>, %arg7: memref<1x1x128xf32, #tpu.memory_space<vmem>>, %arg8: memref<1x128x32xbf16, #tpu.memory_space<vmem>>, %arg9: memref<1x16x32xf32, #tpu.memory_space<vmem>>, %arg10: memref<1x16x32xf32, #tpu.memory_space<vmem>>) attributes {dimension_semantics = [#tpu.dimension_semantics<parallel>, #tpu.dimension_semantics<arbitrary>], iteration_bounds = array<i64: 2, 2>, scalar_prefetch = 0 : i64, scratch_operands = 1 : i64, tpu.core_type = #tpu.core_type<tc>, window_params = [{transform_indices = @transform_0, window_bounds = array<i64: 1, 16, 32>}, {transform_indices = @transform_1, window_bounds = array<i64: 1, 32, 96>}, {transform_indices = @transform_2, window_bounds = array<i64: 1, 32, 32>}, {transform_indices = @transform_3, window_bounds = array<i64: 1, 8, 32>}, {transform_indices = @transform_4, window_bounds = array<i64: 1, 32, 128>}, {transform_indices = @transform_5, window_bounds = array<i64: 1, 1, 128>}, {transform_indices = @transform_6, window_bounds = array<i64: 1, 128, 32>}, {transform_indices = @transform_7, window_bounds = array<i64: 1, 16, 32>}]} {
    %c0_i32 = arith.constant 0 : i32
    %0 = arith.cmpi eq, %arg1, %c0_i32 : i32
    %1 = arith.extui %0 : i1 to i32
    %c0_i32_0 = arith.constant 0 : i32
    %2 = arith.cmpi ne, %1, %c0_i32_0 : i32
    scf.if %2 {
      %c0_49 = arith.constant 0 : index
      %c0_50 = arith.constant 0 : index
      %c0_51 = arith.constant 0 : index
      %135 = vector.load %arg2[%c0_49, %c0_50, %c0_51] : memref<1x16x32xf32, #tpu.memory_space<vmem>>, vector<1x16x32xf32>
      %c0_52 = arith.constant 0 : index
      %c0_53 = arith.constant 0 : index
      %c0_54 = arith.constant 0 : index
      %136 = vector.load %arg10[%c0_52, %c0_53, %c0_54] : memref<1x16x32xf32, #tpu.memory_space<vmem>>, vector<1x16x32xf32>
      tpu.vector_store %arg10[%c0_52, %c0_53, %c0_54], %135 {strides = array<i32>} : memref<1x16x32xf32, #tpu.memory_space<vmem>>, vector<1x16x32xf32>,
    } else {
    }
    %c0 = arith.constant 0 : index
    %c0_1 = arith.constant 0 : index
    %c0_2 = arith.constant 0 : index
    %3 = vector.load %arg3[%c0, %c0_1, %c0_2] : memref<1x32x96xbf16, #tpu.memory_space<vmem>>, vector<1x32x96xbf16>
    %4 = vector.shape_cast %3 : vector<1x32x96xbf16> to vector<32x96xbf16>
    %5 = vector.extract_strided_slice %4 {offsets = [0, 0], sizes = [32, 32], strides = [1, 1]} : vector<32x96xbf16> to vector<32x32xbf16>
    %6 = vector.extract_strided_slice %4 {offsets = [0, 32], sizes = [32, 64], strides = [1, 1]} : vector<32x96xbf16> to vector<32x64xbf16>
    %c0_3 = arith.constant 0 : index
    %c0_4 = arith.constant 0 : index
    %c0_5 = arith.constant 0 : index
    %7 = vector.load %arg4[%c0_3, %c0_4, %c0_5] : memref<1x32x32xbf16, #tpu.memory_space<vmem>>, vector<1x32x32xbf16>
    %8 = vector.shape_cast %7 : vector<1x32x32xbf16> to vector<32x32xbf16>
    %c0_6 = arith.constant 0 : index
    %c0_7 = arith.constant 0 : index
    %c0_8 = arith.constant 0 : index
    %9 = vector.load %arg6[%c0_6, %c0_7, %c0_8] : memref<1x32x128xbf16, #tpu.memory_space<vmem>>, vector<1x32x128xbf16>
    %10 = vector.shape_cast %9 : vector<1x32x128xbf16> to vector<32x128xbf16>
    %c0_9 = arith.constant 0 : index
    %c0_10 = arith.constant 0 : index
    %c0_11 = arith.constant 0 : index
    %11 = vector.load %arg8[%c0_9, %c0_10, %c0_11] : memref<1x128x32xbf16, #tpu.memory_space<vmem>>, vector<1x128x32xbf16>
    %12 = vector.shape_cast %11 : vector<1x128x32xbf16> to vector<128x32xbf16>
    %c0_12 = arith.constant 0 : index
    %c0_13 = arith.constant 0 : index
    %c0_14 = arith.constant 0 : index
    %13 = vector.load %arg7[%c0_12, %c0_13, %c0_14] : memref<1x1x128xf32, #tpu.memory_space<vmem>>, vector<1x1x128xf32>
    %14 = vector.shape_cast %13 : vector<1x1x128xf32> to vector<1x128xf32>
    %c0_15 = arith.constant 0 : index
    %c0_16 = arith.constant 0 : index
    %c0_17 = arith.constant 0 : index
    %15 = vector.load %arg5[%c0_15, %c0_16, %c0_17] : memref<1x8x32xf32, #tpu.memory_space<vmem>>, vector<1x8x32xf32>
    %16 = vector.shape_cast %15 : vector<1x8x32xf32> to vector<8x32xf32>
    %17 = vector.extract_strided_slice %16 {offsets = [0, 0], sizes = [1, 32], strides = [1, 1]} : vector<8x32xf32> to vector<1x32xf32>
    %18 = vector.extract_strided_slice %16 {offsets = [1, 0], sizes = [1, 32], strides = [1, 1]} : vector<8x32xf32> to vector<1x32xf32>
    %19 = vector.extract_strided_slice %16 {offsets = [2, 0], sizes = [1, 32], strides = [1, 1]} : vector<8x32xf32> to vector<1x32xf32>
    %20 = vector.extract_strided_slice %16 {offsets = [3, 0], sizes = [1, 32], strides = [1, 1]} : vector<8x32xf32> to vector<1x32xf32>
    %21 = vector.extract_strided_slice %16 {offsets = [4, 0], sizes = [1, 32], strides = [1, 1]} : vector<8x32xf32> to vector<1x32xf32>
    %22 = vector.extract_strided_slice %16 {offsets = [5, 0], sizes = [1, 32], strides = [1, 1]} : vector<8x32xf32> to vector<1x32xf32>
    %c0_18 = arith.constant 0 : index
    %c0_19 = arith.constant 0 : index
    %c0_20 = arith.constant 0 : index
    %23 = vector.load %arg10[%c0_18, %c0_19, %c0_20] : memref<1x16x32xf32, #tpu.memory_space<vmem>>, vector<1x16x32xf32>
    %24 = vector.shape_cast %23 : vector<1x16x32xf32> to vector<16x32xf32>
    %25 = arith.truncf %24 : vector<16x32xf32> to vector<16x32xbf16>
    %cst = arith.constant dense<0.000000e+00> : vector<16x64xf32>
    %26 = tpu.matmul %25, %6, %cst {dimension_numbers = #tpu.dot_dimension_numbers<[1], [0], [0], [1], [0, 0, 1, 1], [], []>} : vector<16x32xbf16>, vector<32x64xbf16>, vector<16x64xf32> -> vector<16x64xf32>
    %27 = arith.truncf %26 : vector<16x64xf32> to vector<16x64xbf16>
    %28 = vector.extract_strided_slice %27 {offsets = [0, 0], sizes = [16, 32], strides = [1, 1]} : vector<16x64xbf16> to vector<16x32xbf16>
    %29 = vector.shape_cast %28 : vector<16x32xbf16> to vector<1x16x4x8xbf16>
    %30 = tpu.transpose %29, [0, 2, 1, 3] : vector<1x16x4x8xbf16> -> vector<1x4x16x8xbf16>
    %31 = vector.shape_cast %30 : vector<1x4x16x8xbf16> to vector<4x16x8xbf16>
    %32 = vector.extract_strided_slice %27 {offsets = [0, 32], sizes = [16, 32], strides = [1, 1]} : vector<16x64xbf16> to vector<16x32xbf16>
    %33 = vector.shape_cast %32 : vector<16x32xbf16> to vector<1x16x4x8xbf16>
    %34 = tpu.transpose %33, [0, 2, 1, 3] : vector<1x16x4x8xbf16> -> vector<1x4x16x8xbf16>
    %35 = vector.shape_cast %34 : vector<1x4x16x8xbf16> to vector<4x16x8xbf16>
    %c0_21 = arith.constant 0 : index
    %c0_22 = arith.constant 0 : index
    %c0_23 = arith.constant 0 : index
    %36 = vector.load %arg10[%c0_21, %c0_22, %c0_23] : memref<1x16x32xf32, #tpu.memory_space<vmem>>, vector<1x16x32xf32>
    %37 = vector.shape_cast %36 : vector<1x16x32xf32> to vector<16x32xf32>
    %38 = arith.truncf %37 : vector<16x32xf32> to vector<16x32xbf16>
    %cst_24 = arith.constant dense<0.000000e+00> : vector<16x32xf32>
    %39 = tpu.matmul %38, %5, %cst_24 {dimension_numbers = #tpu.dot_dimension_numbers<[1], [0], [0], [1], [0, 0, 1, 1], [], []>} : vector<16x32xbf16>, vector<32x32xbf16>, vector<16x32xf32> -> vector<16x32xf32>
    %40 = arith.truncf %39 : vector<16x32xf32> to vector<16x32xbf16>
    %41 = vector.shape_cast %40 : vector<16x32xbf16> to vector<1x16x4x8xbf16>
    %42 = tpu.transpose %41, [0, 2, 1, 3] : vector<1x16x4x8xbf16> -> vector<1x4x16x8xbf16>
    %43 = vector.shape_cast %42 : vector<1x4x16x8xbf16> to vector<4x16x8xbf16>
    "tpu.trace_start"() <{level = 10 : i32, message = "bqd,bkd->bqk"}> : () -> ()
    %cst_25 = arith.constant dense<0.000000e+00> : vector<4x16x16xf32>
    %44 = tpu.matmul %43, %31, %cst_25 {dimension_numbers = #tpu.dot_dimension_numbers<[2], [2], [1], [1], [0, 0, 0, 1, 1, 1], [0], [0]>} : vector<4x16x8xbf16>, vector<4x16x8xbf16>, vector<4x16x16xf32> -> vector<4x16x16xf32>
    "tpu.trace_stop"() : () -> ()
    %45 = tpu.iota {dimensions = array<i32: 0>} : vector<16x16xi32>
    %c0_i32_26 = arith.constant 0 : i32
    %46 = vector.broadcast %c0_i32_26 : i32 to vector<16x16xi32>
    %47 = arith.addi %46, %45 : vector<16x16xi32>
    %48 = tpu.iota {dimensions = array<i32: 1>} : vector<16x16xi32>
    %49 = arith.cmpi sge, %47, %48 : vector<16x16xi32>
    %50 = vector.shape_cast %49 : vector<16x16xi1> to vector<1x16x16xi1>
    %cst_27 = arith.constant -1.000000e+30 : f32
    %51 = vector.shape_cast %50 : vector<1x16x16xi1> to vector<1x16x16xi1>
    %52 = vector.broadcast %51 : vector<1x16x16xi1> to vector<4x16x16xi1>
    %53 = vector.broadcast %cst_27 : f32 to vector<4x16x16xf32>
    %54 = arith.select %52, %44, %53 : vector<4x16x16xi1>, vector<4x16x16xf32>
    %cst_28 = arith.constant dense<0xFF800000> : vector<4x16xf32>
    %55 = vector.multi_reduction <maximumf>, %54, %cst_28 [2] : vector<4x16x16xf32> to vector<4x16xf32>
    %56 = vector.shape_cast %55 : vector<4x16xf32> to vector<4x16x1xf32>
    %57 = vector.broadcast %56 : vector<4x16x1xf32> to vector<4x16x16xf32>
    %58 = arith.subf %54, %57 : vector<4x16x16xf32>
    %59 = math.exp %58 : vector<4x16x16xf32>
    %cst_29 = arith.constant dense<0.000000e+00> : vector<4x16xf32>
    %60 = vector.multi_reduction <add>, %59, %cst_29 [2] : vector<4x16x16xf32> to vector<4x16xf32>
    %61 = vector.shape_cast %60 : vector<4x16xf32> to vector<4x16x1xf32>
    %62 = tpu.reciprocal %61 {approx = true} : vector<4x16x1xf32> -> vector<4x16x1xf32>
    %63 = vector.broadcast %62 : vector<4x16x1xf32> to vector<4x16x16xf32>
    %64 = arith.mulf %59, %63 : vector<4x16x16xf32>
    %65 = arith.truncf %64 : vector<4x16x16xf32> to vector<4x16x16xbf16>
    "tpu.trace_start"() <{level = 10 : i32, message = "bqk,bkd->bqd"}> : () -> ()
    %cst_30 = arith.constant dense<0.000000e+00> : vector<4x16x8xf32>
    %66 = tpu.matmul %65, %35, %cst_30 {dimension_numbers = #tpu.dot_dimension_numbers<[2], [1], [1], [2], [0, 0, 0, 1, 1, 2], [0], [0]>} : vector<4x16x16xbf16>, vector<4x16x8xbf16>, vector<4x16x8xf32> -> vector<4x16x8xf32>
    "tpu.trace_stop"() : () -> ()
    %67 = vector.shape_cast %66 : vector<4x16x8xf32> to vector<1x4x16x8xf32>
    %68 = tpu.transpose %67, [0, 2, 1, 3] : vector<1x4x16x8xf32> -> vector<1x16x4x8xf32>
    %69 = vector.shape_cast %68 : vector<1x16x4x8xf32> to vector<16x32xf32>
    %70 = arith.truncf %69 : vector<16x32xf32> to vector<16x32xbf16>
    %cst_31 = arith.constant dense<0.000000e+00> : vector<16x32xf32>
    %71 = tpu.matmul %70, %8, %cst_31 {dimension_numbers = #tpu.dot_dimension_numbers<[1], [0], [0], [1], [0, 0, 1, 1], [], []>} : vector<16x32xbf16>, vector<32x32xbf16>, vector<16x32xf32> -> vector<16x32xf32>
    %72 = vector.broadcast %17 : vector<1x32xf32> to vector<16x32xf32>
    %73 = arith.addf %71, %72 : vector<16x32xf32>
    %74 = arith.addf %73, %37 : vector<16x32xf32>
    %cst_32 = arith.constant dense<0.000000e+00> : vector<16xf32>
    %75 = vector.multi_reduction <add>, %74, %cst_32 [1] : vector<16x32xf32> to vector<16xf32>
    %76 = vector.shape_cast %75 : vector<16xf32> to vector<16x1xf32>
    %cst_33 = arith.constant 3.200000e+01 : f32
    %77 = vector.broadcast %cst_33 : f32 to vector<16x1xf32>
    %78 = arith.divf %76, %77 : vector<16x1xf32>
    %79 = vector.broadcast %78 : vector<16x1xf32> to vector<16x32xf32>
    %80 = arith.subf %74, %79 : vector<16x32xf32>
    %81 = arith.mulf %80, %80 : vector<16x32xf32>
    %cst_34 = arith.constant dense<0.000000e+00> : vector<16xf32>
    %82 = vector.multi_reduction <add>, %81, %cst_34 [1] : vector<16x32xf32> to vector<16xf32>
    %83 = vector.shape_cast %82 : vector<16xf32> to vector<16x1xf32>
    %cst_35 = arith.constant 3.200000e+01 : f32
    %84 = vector.broadcast %cst_35 : f32 to vector<16x1xf32>
    %85 = arith.divf %83, %84 : vector<16x1xf32>
    %86 = vector.broadcast %78 : vector<16x1xf32> to vector<16x32xf32>
    %87 = arith.subf %74, %86 : vector<16x32xf32>
    %cst_36 = arith.constant 9.99999974E-6 : f32
    %88 = vector.broadcast %cst_36 : f32 to vector<16x1xf32>
    %89 = arith.addf %85, %88 : vector<16x1xf32>
    %90 = math.rsqrt %89 : vector<16x1xf32>
    %91 = vector.broadcast %90 : vector<16x1xf32> to vector<16x32xf32>
    %92 = arith.mulf %87, %91 : vector<16x32xf32>
    %93 = vector.broadcast %18 : vector<1x32xf32> to vector<16x32xf32>
    %94 = arith.mulf %92, %93 : vector<16x32xf32>
    %95 = vector.broadcast %19 : vector<1x32xf32> to vector<16x32xf32>
    %96 = arith.addf %94, %95 : vector<16x32xf32>
    %97 = arith.truncf %96 : vector<16x32xf32> to vector<16x32xbf16>
    %cst_37 = arith.constant dense<0.000000e+00> : vector<16x128xf32>
    %98 = tpu.matmul %97, %10, %cst_37 {dimension_numbers = #tpu.dot_dimension_numbers<[1], [0], [0], [1], [0, 0, 1, 1], [], []>} : vector<16x32xbf16>, vector<32x128xbf16>, vector<16x128xf32> -> vector<16x128xf32>
    %99 = vector.broadcast %14 : vector<1x128xf32> to vector<16x128xf32>
    %100 = arith.addf %98, %99 : vector<16x128xf32>
    %cst_38 = arith.constant 0.000000e+00 : f32
    %101 = vector.broadcast %cst_38 : f32 to vector<16x128xf32>
    %102 = arith.maximumf %100, %101 : vector<16x128xf32>
    %103 = arith.truncf %102 : vector<16x128xf32> to vector<16x128xbf16>
    %cst_39 = arith.constant dense<0.000000e+00> : vector<16x32xf32>
    %104 = tpu.matmul %103, %12, %cst_39 {dimension_numbers = #tpu.dot_dimension_numbers<[1], [0], [0], [1], [0, 0, 1, 1], [], []>} : vector<16x128xbf16>, vector<128x32xbf16>, vector<16x32xf32> -> vector<16x32xf32>
    %105 = vector.broadcast %22 : vector<1x32xf32> to vector<16x32xf32>
    %106 = arith.addf %104, %105 : vector<16x32xf32>
    %107 = arith.addf %106, %96 : vector<16x32xf32>
    %cst_40 = arith.constant dense<0.000000e+00> : vector<16xf32>
    %108 = vector.multi_reduction <add>, %107, %cst_40 [1] : vector<16x32xf32> to vector<16xf32>
    %109 = vector.shape_cast %108 : vector<16xf32> to vector<16x1xf32>
    %cst_41 = arith.constant 3.200000e+01 : f32
    %110 = vector.broadcast %cst_41 : f32 to vector<16x1xf32>
    %111 = arith.divf %109, %110 : vector<16x1xf32>
    %112 = vector.broadcast %111 : vector<16x1xf32> to vector<16x32xf32>
    %113 = arith.subf %107, %112 : vector<16x32xf32>
    %114 = arith.mulf %113, %113 : vector<16x32xf32>
    %cst_42 = arith.constant dense<0.000000e+00> : vector<16xf32>
    %115 = vector.multi_reduction <add>, %114, %cst_42 [1] : vector<16x32xf32> to vector<16xf32>
    %116 = vector.shape_cast %115 : vector<16xf32> to vector<16x1xf32>
    %cst_43 = arith.constant 3.200000e+01 : f32
    %117 = vector.broadcast %cst_43 : f32 to vector<16x1xf32>
    %118 = arith.divf %116, %117 : vector<16x1xf32>
    %119 = vector.broadcast %111 : vector<16x1xf32> to vector<16x32xf32>
    %120 = arith.subf %107, %119 : vector<16x32xf32>
    %cst_44 = arith.constant 9.99999974E-6 : f32
    %121 = vector.broadcast %cst_44 : f32 to vector<16x1xf32>
    %122 = arith.addf %118, %121 : vector<16x1xf32>
    %123 = math.rsqrt %122 : vector<16x1xf32>
    %124 = vector.broadcast %123 : vector<16x1xf32> to vector<16x32xf32>
    %125 = arith.mulf %120, %124 : vector<16x32xf32>
    %126 = vector.broadcast %20 : vector<1x32xf32> to vector<16x32xf32>
    %127 = arith.mulf %125, %126 : vector<16x32xf32>
    %128 = vector.broadcast %21 : vector<1x32xf32> to vector<16x32xf32>
    %129 = arith.addf %127, %128 : vector<16x32xf32>
    %130 = vector.shape_cast %129 : vector<16x32xf32> to vector<1x16x32xf32>
    %c0_45 = arith.constant 0 : index
    %c0_46 = arith.constant 0 : index
    %c0_47 = arith.constant 0 : index
    %131 = vector.load %arg10[%c0_45, %c0_46, %c0_47] : memref<1x16x32xf32, #tpu.memory_space<vmem>>, vector<1x16x32xf32>
    tpu.vector_store %arg10[%c0_45, %c0_46, %c0_47], %130 {strides = array<i32>} : memref<1x16x32xf32, #tpu.memory_space<vmem>>, vector<1x16x32xf32>,
    %c1_i32 = arith.constant 1 : i32
    %132 = arith.cmpi eq, %arg1, %c1_i32 : i32
    %133 = arith.extui %132 : i1 to i32
    %c0_i32_48 = arith.constant 0 : i32
    %134 = arith.cmpi ne, %133, %c0_i32_48 : i32
    scf.if %134 {
      %c0_49 = arith.constant 0 : index
      %c0_50 = arith.constant 0 : index
      %c0_51 = arith.constant 0 : index
      %135 = vector.load %arg10[%c0_49, %c0_50, %c0_51] : memref<1x16x32xf32, #tpu.memory_space<vmem>>, vector<1x16x32xf32>
      %cst_52 = arith.constant dense<0xFF800000> : vector<1x16xf32>
      %136 = vector.multi_reduction <maximumf>, %135, %cst_52 [2] : vector<1x16x32xf32> to vector<1x16xf32>
      %137 = vector.shape_cast %136 : vector<1x16xf32> to vector<1x16x1xf32>
      %138 = vector.broadcast %137 : vector<1x16x1xf32> to vector<1x16x32xf32>
      %139 = arith.subf %135, %138 : vector<1x16x32xf32>
      %140 = math.exp %139 : vector<1x16x32xf32>
      %cst_53 = arith.constant dense<0.000000e+00> : vector<1x16xf32>
      %141 = vector.multi_reduction <add>, %140, %cst_53 [2] : vector<1x16x32xf32> to vector<1x16xf32>
      %142 = vector.shape_cast %141 : vector<1x16xf32> to vector<1x16x1xf32>
      %143 = math.log %142 : vector<1x16x1xf32>
      %144 = vector.broadcast %143 : vector<1x16x1xf32> to vector<1x16x32xf32>
      %145 = arith.subf %139, %144 : vector<1x16x32xf32>
      %c0_54 = arith.constant 0 : index
      %c0_55 = arith.constant 0 : index
      %c0_56 = arith.constant 0 : index
      %146 = vector.load %arg9[%c0_54, %c0_55, %c0_56] : memref<1x16x32xf32, #tpu.memory_space<vmem>>, vector<1x16x32xf32>
      tpu.vector_store %arg9[%c0_54, %c0_55, %c0_56], %145 {strides = array<i32>} : memref<1x16x32xf32, #tpu.memory_space<vmem>>, vector<1x16x32xf32>,
    } else {
    }
    return
  }
  func.func @transform_0(%arg0: i32, %arg1: i32) -> (i32, i32, i32) {
    %c0_i32 = arith.constant 0 : i32
    %c0_i32_0 = arith.constant 0 : i32
    %c0_i32_1 = arith.constant 0 : i32
    return %arg0, %c0_i32, %c0_i32_0 : i32, i32, i32
  }
  func.func @transform_1(%arg0: i32, %arg1: i32) -> (i32, i32, i32) {
    %c0_i32 = arith.constant 0 : i32
    %c0_i32_0 = arith.constant 0 : i32
    %c0_i32_1 = arith.constant 0 : i32
    return %arg1, %c0_i32, %c0_i32_0 : i32, i32, i32
  }
  func.func @transform_2(%arg0: i32, %arg1: i32) -> (i32, i32, i32) {
    %c0_i32 = arith.constant 0 : i32
    %c0_i32_0 = arith.constant 0 : i32
    %c0_i32_1 = arith.constant 0 : i32
    return %arg1, %c0_i32, %c0_i32_0 : i32, i32, i32
  }
  func.func @transform_3(%arg0: i32, %arg1: i32) -> (i32, i32, i32) {
    %c0_i32 = arith.constant 0 : i32
    %c0_i32_0 = arith.constant 0 : i32
    %c0_i32_1 = arith.constant 0 : i32
    return %arg1, %c0_i32, %c0_i32_0 : i32, i32, i32
  }
  func.func @transform_4(%arg0: i32, %arg1: i32) -> (i32, i32, i32) {
    %c0_i32 = arith.constant 0 : i32
    %c0_i32_0 = arith.constant 0 : i32
    %c0_i32_1 = arith.constant 0 : i32
    return %arg1, %c0_i32, %c0_i32_0 : i32, i32, i32
  }
  func.func @transform_5(%arg0: i32, %arg1: i32) -> (i32, i32, i32) {
    %c0_i32 = arith.constant 0 : i32
    %c0_i32_0 = arith.constant 0 : i32
    %c0_i32_1 = arith.constant 0 : i32
    return %arg1, %c0_i32, %c0_i32_0 : i32, i32, i32
  }
  func.func @transform_6(%arg0: i32, %arg1: i32) -> (i32, i32, i32) {
    %c0_i32 = arith.constant 0 : i32
    %c0_i32_0 = arith.constant 0 : i32
    %c0_i32_1 = arith.constant 0 : i32
    return %arg1, %c0_i32, %c0_i32_0 : i32, i32, i32
  }
  func.func @transform_7(%arg0: i32, %arg1: i32) -> (i32, i32, i32) {
    %c0_i32 = arith.constant 0 : i32
    %c0_i32_0 = arith.constant 0 : i32
    %c0_i32_1 = arith.constant 0 : i32
    return %arg0, %c0_i32, %c0_i32_0 : i32, i32, i32
  }
}

</mosaic_0001>

<llo_original>
// kernel: tpu_custom_call.1
$region0: #{tpu_custom_call.1}
  #allocation0 [shape = 'u32[]', space=smem, size = 0x4, offset = 0x4, fixed_abs, tag = 'smem constant byte address 0x4 - core index']
  #allocation1 [shape = 'u32[144,128]{1,0:T(1,128)}', space=vmem, size = 0x12000, scoped, tag = 'internal scratch']
  #allocation2 [shape = 'f32[1,16,32]{2,1,0:T(8,128)}', space=vmem, size = 0x2000, scoped, tag = 'scratch operand']
  %s0 = inlined_call_operand.vmem [shape: f32[2,16,32], index: 0, kind: input, shape index: {}]
  %s1 = inlined_call_operand.vmem [shape: bf16[2,32,96], index: 1, kind: input, shape index: {}]
  %s2 = inlined_call_operand.vmem [shape: bf16[2,32,32], index: 2, kind: input, shape index: {}]
  %s3 = inlined_call_operand.vmem [shape: f32[2,8,32], index: 3, kind: input, shape index: {}]
  %s4 = inlined_call_operand.vmem [shape: bf16[2,32,128], index: 4, kind: input, shape index: {}]
  %s5 = inlined_call_operand.vmem [shape: f32[2,1,128], index: 5, kind: input, shape index: {}]
  %s6 = inlined_call_operand.vmem [shape: bf16[2,128,32], index: 6, kind: input, shape index: {}]
  %s7 = inlined_call_operand.hbm [shape: f32[2,16,32], index: 7, kind: output, shape index: {}]
  %s8 = sld [smem:[#allocation0]]
  $region69: #{tpu_custom_call.1} parent=0
    _
  %s10 = ssub.s32 1, %s8
  %s11 = scalar_select 0, %s10, %s8
  $region1: #{tpu_custom_call.1} parent=0
    #allocation3 [shape = 'u8[16384]{0}', space=vmem, size = 0x4000, scoped, tag = 'output window, operand 0']
    #allocation4 [shape = 's32[2]{0}', space=sflag, size = 0x8, scoped, tag = 'scoped memory for tpu_custom_call.1']
    %12 = vsyncpa [#allocation4], 0
    %s13 = scalar_lea.sflag [#allocation4], 1
    %14 = vsyncpa %s13, 0
    loop: start=0, step=1, limit=6
    $region2: #{tpu_custom_call.1} parent=1 // loop_pre_header
      _
    $region3: #{tpu_custom_call.1} parent=1 // loop_header
      %s16 = sphi 0, %s20
      %p17 = scmp.ge.s32.totalorder %s16, 6
      %s23 = sphi 0, %s35
      %s24 = sphi 0, %s31
      %s25 = sphi 0, %s23
      %s26 = sphi 0, %s24
      %s27 = sphi 0, %s25
      %s28 = sphi 0, %s26
      %s38 = sphi 0, %s40
      %s41 = sphi 0, %s38
      %s42 = sphi 0, %s41
      %s58 = sphi 0, %s42
      %s64 = sphi 0, %s66
      %s67 = sphi 0, %s64
      %s68 = sphi 0, %s67
      %s84 = sphi 0, %s68
      %s90 = sphi 0, %s92
      %s93 = sphi 0, %s90
      %s94 = sphi 0, %s93
      %s110 = sphi 0, %s94
      %s116 = sphi 0, %s118
      %s119 = sphi 0, %s116
      %s120 = sphi 0, %s119
      %s136 = sphi 0, %s120
      %s142 = sphi 0, %s144
      %s145 = sphi 0, %s142
      %s146 = sphi 0, %s145
      %s162 = sphi 0, %s146
      %s168 = sphi 0, %s170
      %s171 = sphi 0, %s168
      %s172 = sphi 0, %s171
      %s188 = sphi 0, %s172
      %s194 = sphi 0, %s196
      %s197 = sphi 0, %s194
      %s198 = sphi 0, %s197
      %s214 = sphi 0, %s198
      %s220 = sphi 0, %s222
      %s223 = sphi 0, %s220
      %s224 = sphi 0, %s223
      %s240 = sphi 0, %s224
    $region4: #{tpu_custom_call.1} parent=1 // loop_header_branch
      %19 = sbr.rel (%p17) target = $region8
    $region5: #{tpu_custom_call.1} parent=1 // loop_body
      %s21 = ssub.s32 %s16, 1
      %s22 = ssub.s32 %s16, 2
      %s29 = sadd.s32 1, %s24
      %p30 = scmp.ge.s32.totalorder %s29, 2
      %s31 = scalar_select %p30, 0, %s29
      %s32 = sadd.s32 1, %s23
      %s33 = scalar_select %p30, %s32, %s23
      %p34 = scmp.ge.s32.totalorder %s33, 2
      %s35 = scalar_select %p34, 0, %s33
      %s36 = ssub.s32 %s23, %s35
      %p37 = scmp.eq.s32.totalorder %s36, 0
      %s39 = sadd.s32 %s38, 1
      %s40 = scalar_select %p37, %s38, %s39
      %p43 = pneg %p37
      %p44 = scmp.eq.s32.totalorder %s16, 3
      %p45 = por %p43, %p44
      %p46 = scmp.ne.s32.totalorder %s38, %s41
      %p47 = scmp.eq.s32.totalorder %s16, 0
      %p48 = por %p46, %p47
      %p49 = scmp.ne.s32.totalorder %s38, %s41
      %p50 = scmp.eq.s32.totalorder %s21, 3
      %p51 = por %p49, %p50
      %p52 = scmp.ne.s32.totalorder %s41, %s42
      %p53 = scmp.eq.s32.totalorder %s21, 0
      %p54 = por %p52, %p53
      %p55 = scmp.ne.s32.totalorder %s41, %s42
      %p56 = scmp.eq.s32.totalorder %s22, 3
      %p57 = por %p55, %p56
      %p59 = scmp.ne.s32.totalorder %s42, %s58
      %p60 = scmp.eq.s32.totalorder %s22, 0
      %p61 = por %p59, %p60
      %s62 = ssub.s32 %s24, %s31
      %p63 = scmp.eq.s32.totalorder %s62, 0
      %s65 = sadd.s32 %s64, 1
      %s66 = scalar_select %p63, %s64, %s65
      %p69 = pneg %p63
      %p70 = scmp.eq.s32.totalorder %s16, 3
      %p71 = por %p69, %p70
      %p72 = scmp.ne.s32.totalorder %s64, %s67
      %p73 = scmp.eq.s32.totalorder %s16, 0
      %p74 = por %p72, %p73
      %p75 = scmp.ne.s32.totalorder %s64, %s67
      %p76 = scmp.eq.s32.totalorder %s21, 3
      %p77 = por %p75, %p76
      %p78 = scmp.ne.s32.totalorder %s67, %s68
      %p79 = scmp.eq.s32.totalorder %s21, 0
      %p80 = por %p78, %p79
      %p81 = scmp.ne.s32.totalorder %s67, %s68
      %p82 = scmp.eq.s32.totalorder %s22, 3
      %p83 = por %p81, %p82
      %p85 = scmp.ne.s32.totalorder %s68, %s84
      %p86 = scmp.eq.s32.totalorder %s22, 0
      %p87 = por %p85, %p86
      %s88 = ssub.s32 %s24, %s31
      %p89 = scmp.eq.s32.totalorder %s88, 0
      %s91 = sadd.s32 %s90, 1
      %s92 = scalar_select %p89, %s90, %s91
      %p95 = pneg %p89
      %p96 = scmp.eq.s32.totalorder %s16, 3
      %p97 = por %p95, %p96
      %p98 = scmp.ne.s32.totalorder %s90, %s93
      %p99 = scmp.eq.s32.totalorder %s16, 0
      %p100 = por %p98, %p99
      %p101 = scmp.ne.s32.totalorder %s90, %s93
      %p102 = scmp.eq.s32.totalorder %s21, 3
      %p103 = por %p101, %p102
      %p104 = scmp.ne.s32.totalorder %s93, %s94
      %p105 = scmp.eq.s32.totalorder %s21, 0
      %p106 = por %p104, %p105
      %p107 = scmp.ne.s32.totalorder %s93, %s94
      %p108 = scmp.eq.s32.totalorder %s22, 3
      %p109 = por %p107, %p108
      %p111 = scmp.ne.s32.totalorder %s94, %s110
      %p112 = scmp.eq.s32.totalorder %s22, 0
      %p113 = por %p111, %p112
      %s114 = ssub.s32 %s24, %s31
      %p115 = scmp.eq.s32.totalorder %s114, 0
      %s117 = sadd.s32 %s116, 1
      %s118 = scalar_select %p115, %s116, %s117
      %p121 = pneg %p115
      %p122 = scmp.eq.s32.totalorder %s16, 3
      %p123 = por %p121, %p122
      %p124 = scmp.ne.s32.totalorder %s116, %s119
      %p125 = scmp.eq.s32.totalorder %s16, 0
      %p126 = por %p124, %p125
      %p127 = scmp.ne.s32.totalorder %s116, %s119
      %p128 = scmp.eq.s32.totalorder %s21, 3
      %p129 = por %p127, %p128
      %p130 = scmp.ne.s32.totalorder %s119, %s120
      %p131 = scmp.eq.s32.totalorder %s21, 0
      %p132 = por %p130, %p131
      %p133 = scmp.ne.s32.totalorder %s119, %s120
      %p134 = scmp.eq.s32.totalorder %s22, 3
      %p135 = por %p133, %p134
      %p137 = scmp.ne.s32.totalorder %s120, %s136
      %p138 = scmp.eq.s32.totalorder %s22, 0
      %p139 = por %p137, %p138
      %s140 = ssub.s32 %s24, %s31
      %p141 = scmp.eq.s32.totalorder %s140, 0
      %s143 = sadd.s32 %s142, 1
      %s144 = scalar_select %p141, %s142, %s143
      %p147 = pneg %p141
      %p148 = scmp.eq.s32.totalorder %s16, 3
      %p149 = por %p147, %p148
      %p150 = scmp.ne.s32.totalorder %s142, %s145
      %p151 = scmp.eq.s32.totalorder %s16, 0
      %p152 = por %p150, %p151
      %p153 = scmp.ne.s32.totalorder %s142, %s145
      %p154 = scmp.eq.s32.totalorder %s21, 3
      %p155 = por %p153, %p154
      %p156 = scmp.ne.s32.totalorder %s145, %s146
      %p157 = scmp.eq.s32.totalorder %s21, 0
      %p158 = por %p156, %p157
      %p159 = scmp.ne.s32.totalorder %s145, %s146
      %p160 = scmp.eq.s32.totalorder %s22, 3
      %p161 = por %p159, %p160
      %p163 = scmp.ne.s32.totalorder %s146, %s162
      %p164 = scmp.eq.s32.totalorder %s22, 0
      %p165 = por %p163, %p164
      %s166 = ssub.s32 %s24, %s31
      %p167 = scmp.eq.s32.totalorder %s166, 0
      %s169 = sadd.s32 %s168, 1
      %s170 = scalar_select %p167, %s168, %s169
      %p173 = pneg %p167
      %p174 = scmp.eq.s32.totalorder %s16, 3
      %p175 = por %p173, %p174
      %p176 = scmp.ne.s32.totalorder %s168, %s171
      %p177 = scmp.eq.s32.totalorder %s16, 0
      %p178 = por %p176, %p177
      %p179 = scmp.ne.s32.totalorder %s168, %s171
      %p180 = scmp.eq.s32.totalorder %s21, 3
      %p181 = por %p179, %p180
      %p182 = scmp.ne.s32.totalorder %s171, %s172
      %p183 = scmp.eq.s32.totalorder %s21, 0
      %p184 = por %p182, %p183
      %p185 = scmp.ne.s32.totalorder %s171, %s172
      %p186 = scmp.eq.s32.totalorder %s22, 3
      %p187 = por %p185, %p186
      %p189 = scmp.ne.s32.totalorder %s172, %s188
      %p190 = scmp.eq.s32.totalorder %s22, 0
      %p191 = por %p189, %p190
      %s192 = ssub.s32 %s24, %s31
      %p193 = scmp.eq.s32.totalorder %s192, 0
      %s195 = sadd.s32 %s194, 1
      %s196 = scalar_select %p193, %s194, %s195
      %p199 = pneg %p193
      %p200 = scmp.eq.s32.totalorder %s16, 3
      %p201 = por %p199, %p200
      %p202 = scmp.ne.s32.totalorder %s194, %s197
      %p203 = scmp.eq.s32.totalorder %s16, 0
      %p204 = por %p202, %p203
      %p205 = scmp.ne.s32.totalorder %s194, %s197
      %p206 = scmp.eq.s32.totalorder %s21, 3
      %p207 = por %p205, %p206
      %p208 = scmp.ne.s32.totalorder %s197, %s198
      %p209 = scmp.eq.s32.totalorder %s21, 0
      %p210 = por %p208, %p209
      %p211 = scmp.ne.s32.totalorder %s197, %s198
      %p212 = scmp.eq.s32.totalorder %s22, 3
      %p213 = por %p211, %p212
      %p215 = scmp.ne.s32.totalorder %s198, %s214
      %p216 = scmp.eq.s32.totalorder %s22, 0
      %p217 = por %p215, %p216
      %s218 = ssub.s32 %s23, %s35
      %p219 = scmp.eq.s32.totalorder %s218, 0
      %s221 = sadd.s32 %s220, 1
      %s222 = scalar_select %p219, %s220, %s221
      %p225 = pneg %p219
      %p226 = scmp.eq.s32.totalorder %s16, 3
      %p227 = por %p225, %p226
      %p228 = scmp.ne.s32.totalorder %s220, %s223
      %p229 = scmp.eq.s32.totalorder %s16, 0
      %p230 = por %p228, %p229
      %p231 = scmp.ne.s32.totalorder %s220, %s223
      %p232 = scmp.eq.s32.totalorder %s21, 3
      %p233 = por %p231, %p232
      %p234 = scmp.ne.s32.totalorder %s223, %s224
      %p235 = scmp.eq.s32.totalorder %s21, 0
      %p236 = por %p234, %p235
      %p237 = scmp.ne.s32.totalorder %s223, %s224
      %p238 = scmp.eq.s32.totalorder %s22, 3
      %p239 = por %p237, %p238
      %p241 = scmp.ne.s32.totalorder %s224, %s240
      %p242 = scmp.eq.s32.totalorder %s22, 0
      %p243 = por %p241, %p242
      %p244 = scmp.le.s32.totalorder 1, %s16
      %p245 = scmp.lt.s32.totalorder %s16, 5
      %p246 = pnand %p244, %p245
      %p247 = pneg %p246
      // Predicated region
      $region9: #{tpu_custom_call.1} parent=5 // pred_check
        _
      $region10: #{tpu_custom_call.1} parent=5 // pred_check_branch
        %249 = sbr.rel (%p246) target = $region12
      $region11: #{tpu_custom_call.1} parent=5 // pred_region
        %s250 = ssub.s32 %s16, 1
      $region12: #{tpu_custom_call.1} parent=5 // pred_fallthru
        _
      %p251 = scmp.lt.s32.totalorder %s16, 4
      // Predicated region
      $region13: #{tpu_custom_call.1} parent=5 // pred_check
        %p252 = pneg %p251
      $region14: #{tpu_custom_call.1} parent=5 // pred_check_branch
        %254 = sbr.rel (%p252) target = $region16
      $region15: #{tpu_custom_call.1} parent=5 // pred_region
        // Predicated region
        $region17: #{tpu_custom_call.1} parent=15 // pred_check
          %p255 = pneg %p48
        $region18: #{tpu_custom_call.1} parent=15 // pred_check_branch
          %257 = sbr.rel (%p255) target = $region20
        $region19: #{tpu_custom_call.1} parent=15 // pred_region
          %p258 = scmp.lt.s32.totalorder %s23, 1
          %s259 = scalar_select %p258, %s23, 1
          %s260 = smul.addr %s259, 2
          %s261 = smul.addr %s260, 8
          %s262 = scalar_lea.vmem %s0, %s261
        $region20: #{tpu_custom_call.1} parent=15 // pred_fallthru
          _
        // Predicated region
        $region21: #{tpu_custom_call.1} parent=15 // pred_check
          %p263 = pneg %p74
        $region22: #{tpu_custom_call.1} parent=15 // pred_check_branch
          %265 = sbr.rel (%p263) target = $region24
        $region23: #{tpu_custom_call.1} parent=15 // pred_region
          %p266 = scmp.lt.s32.totalorder %s24, 1
          %s267 = scalar_select %p266, %s24, 1
          %s268 = smul.addr %s267, 4
          %s269 = smul.addr %s268, 4
          %s270 = scalar_lea.vmem %s1, %s269
        $region24: #{tpu_custom_call.1} parent=15 // pred_fallthru
          _
        // Predicated region
        $region25: #{tpu_custom_call.1} parent=15 // pred_check
          %p271 = pneg %p100
        $region26: #{tpu_custom_call.1} parent=15 // pred_check_branch
          %273 = sbr.rel (%p271) target = $region28
        $region27: #{tpu_custom_call.1} parent=15 // pred_region
          %p274 = scmp.lt.s32.totalorder %s24, 1
          %s275 = scalar_select %p274, %s24, 1
          %s276 = smul.addr %s275, 4
          %s277 = smul.addr %s276, 4
          %s278 = scalar_lea.vmem %s2, %s277
        $region28: #{tpu_custom_call.1} parent=15 // pred_fallthru
          _
        // Predicated region
        $region29: #{tpu_custom_call.1} parent=15 // pred_check
          %p279 = pneg %p126
        $region30: #{tpu_custom_call.1} parent=15 // pred_check_branch
          %281 = sbr.rel (%p279) target = $region32
        $region31: #{tpu_custom_call.1} parent=15 // pred_region
          %p282 = scmp.lt.s32.totalorder %s24, 1
          %s283 = scalar_select %p282, %s24, 1
          %s284 = smul.addr %s283, 8
          %s285 = scalar_lea.vmem %s3, %s284
        $region32: #{tpu_custom_call.1} parent=15 // pred_fallthru
          _
        // Predicated region
        $region33: #{tpu_custom_call.1} parent=15 // pred_check
          %p286 = pneg %p152
        $region34: #{tpu_custom_call.1} parent=15 // pred_check_branch
          %288 = sbr.rel (%p286) target = $region36
        $region35: #{tpu_custom_call.1} parent=15 // pred_region
          %p289 = scmp.lt.s32.totalorder %s24, 1
          %s290 = scalar_select %p289, %s24, 1
          %s291 = smul.addr %s290, 4
          %s292 = smul.addr %s291, 4
          %s293 = scalar_lea.vmem %s4, %s292
        $region36: #{tpu_custom_call.1} parent=15 // pred_fallthru
          _
        // Predicated region
        $region37: #{tpu_custom_call.1} parent=15 // pred_check
          %p294 = pneg %p178
        $region38: #{tpu_custom_call.1} parent=15 // pred_check_branch
          %296 = sbr.rel (%p294) target = $region40
        $region39: #{tpu_custom_call.1} parent=15 // pred_region
          %p297 = scmp.lt.s32.totalorder %s24, 1
          %s298 = scalar_select %p297, %s24, 1
          %s299 = scalar_lea.vmem %s5, %s298
        $region40: #{tpu_custom_call.1} parent=15 // pred_fallthru
          _
        // Predicated region
        $region41: #{tpu_custom_call.1} parent=15 // pred_check
          %p300 = pneg %p204
        $region42: #{tpu_custom_call.1} parent=15 // pred_check_branch
          %302 = sbr.rel (%p300) target = $region44
        $region43: #{tpu_custom_call.1} parent=15 // pred_region
          %p303 = scmp.lt.s32.totalorder %s24, 1
          %s304 = scalar_select %p303, %s24, 1
          %s305 = smul.addr %s304, 16
          %s306 = smul.addr %s305, 4
          %s307 = scalar_lea.vmem %s6, %s306
        $region44: #{tpu_custom_call.1} parent=15 // pred_fallthru
          _
      $region16: #{tpu_custom_call.1} parent=5 // pred_fallthru
        _
      %p308 = scmp.le.s32.totalorder 1, %s16
      %p309 = scmp.lt.s32.totalorder %s16, 5
      %p310 = pnand %p308, %p309
      %p311 = pneg %p310
      // Predicated region
      $region45: #{tpu_custom_call.1} parent=5 // pred_check
        _
      $region46: #{tpu_custom_call.1} parent=5 // pred_check_branch
        %313 = sbr.rel (%p310) target = $region48
      $region47: #{tpu_custom_call.1} parent=5 // pred_region
        %s314 = ssub.s32 %s16, 1
        %p315 = scmp.lt.s32.totalorder %s25, 1
        %s316 = scalar_select %p315, %s25, 1
        %s317 = smul.addr %s316, 2
        %s318 = smul.addr %s317, 8
        %s319 = scalar_lea.vmem %s0, %s318
        %p320 = pneg %p54
        %p321 = pneg %p51
        %p322 = scmp.lt.s32.totalorder %s26, 1
        %s323 = scalar_select %p322, %s26, 1
        %s324 = smul.addr %s323, 4
        %s325 = smul.addr %s324, 4
        %s326 = scalar_lea.vmem %s1, %s325
        %p327 = pneg %p80
        %p328 = pneg %p77
        %p329 = scmp.lt.s32.totalorder %s26, 1
        %s330 = scalar_select %p329, %s26, 1
        %s331 = smul.addr %s330, 4
        %s332 = smul.addr %s331, 4
        %s333 = scalar_lea.vmem %s2, %s332
        %p334 = pneg %p106
        %p335 = pneg %p103
        %p336 = scmp.lt.s32.totalorder %s26, 1
        %s337 = scalar_select %p336, %s26, 1
        %s338 = smul.addr %s337, 8
        %s339 = scalar_lea.vmem %s3, %s338
        %p340 = pneg %p132
        %p341 = pneg %p129
        %p342 = scmp.lt.s32.totalorder %s26, 1
        %s343 = scalar_select %p342, %s26, 1
        %s344 = smul.addr %s343, 4
        %s345 = smul.addr %s344, 4
        %s346 = scalar_lea.vmem %s4, %s345
        %p347 = pneg %p158
        %p348 = pneg %p155
        %p349 = scmp.lt.s32.totalorder %s26, 1
        %s350 = scalar_select %p349, %s26, 1
        %s351 = scalar_lea.vmem %s5, %s350
        %p352 = pneg %p184
        %p353 = pneg %p181
        %p354 = scmp.lt.s32.totalorder %s26, 1
        %s355 = scalar_select %p354, %s26, 1
        %s356 = smul.addr %s355, 16
        %s357 = smul.addr %s356, 4
        %s358 = scalar_lea.vmem %s6, %s357
        %p359 = pneg %p210
        %p360 = pneg %p207
        %p361 = pneg %p236
        %p362 = pneg %p233
        %s363 = sand.u32 %s223, 1
        %s364 = scalar_lea.sflag [#allocation4], %s363
        %s365 = sand.u32 %s223, 1
        %s366 = smul.addr %s365, 16
        %s367 = scalar_lea.vmem [#allocation3], %s366
        %p368 = scmp.lt.s32.totalorder %s25, 1
        %s369 = scalar_select %p368, %s25, 1
        %s370 = smul.addr %s369, 2
        %s371 = smul.addr %s370, 8
        %s372 = scalar_lea.vmem %s0, %s371
        %p373 = scmp.lt.s32.totalorder %s26, 1
        %s374 = scalar_select %p373, %s26, 1
        %s375 = smul.addr %s374, 4
        %s376 = smul.addr %s375, 4
        %s377 = scalar_lea.vmem %s1, %s376
        %p378 = scmp.lt.s32.totalorder %s26, 1
        %s379 = scalar_select %p378, %s26, 1
        %s380 = smul.addr %s379, 4
        %s381 = smul.addr %s380, 4
        %s382 = scalar_lea.vmem %s2, %s381
        %p383 = scmp.lt.s32.totalorder %s26, 1
        %s384 = scalar_select %p383, %s26, 1
        %s385 = smul.addr %s384, 8
        %s386 = scalar_lea.vmem %s3, %s385
        %p387 = scmp.lt.s32.totalorder %s26, 1
        %s388 = scalar_select %p387, %s26, 1
        %s389 = smul.addr %s388, 4
        %s390 = smul.addr %s389, 4
        %s391 = scalar_lea.vmem %s4, %s390
        %p392 = scmp.lt.s32.totalorder %s26, 1
        %s393 = scalar_select %p392, %s26, 1
        %s394 = scalar_lea.vmem %s5, %s393
        %p395 = scmp.lt.s32.totalorder %s26, 1
        %s396 = scalar_select %p395, %s26, 1
        %s397 = smul.addr %s396, 16
        %s398 = smul.addr %s397, 4
        %s399 = scalar_lea.vmem %s6, %s398
        %p401 = scmp.eq.s32.totalorder %s26, 0
        // Predicated region
        $region49: #{tpu_custom_call.1} parent=47 // pred_check
          %p402 = pneg %p401
        $region50: #{tpu_custom_call.1} parent=47 // pred_check_branch
          %404 = sbr.rel (%p402) target = $region52
        $region51: #{tpu_custom_call.1} parent=47 // pred_region
          %v405 = vld [vmem:[%s372] sm:$0xff]
          %v406 = vld [vmem:[%s372 + $0x8] sm:$0xff]
          %vm407 = vcmask 261120
          %408 = vst.msk [vmem:[#allocation2] sm:$0xff] %vm407, %v405
          %409 = vst.msk [vmem:[#allocation2 + $0x8] sm:$0xff] %vm407, %v406
        $region52: #{tpu_custom_call.1} parent=47 // pred_fallthru
          _
        %v410 = vld [vmem:[%s377] sm:$0xf]
        %v411 = vld [vmem:[%s377 + $0x4] sm:$0xf]
        %v412 = vld [vmem:[%s377 + $0x8] sm:$0xf]
        %v413 = vld [vmem:[%s377 + $0xc] sm:$0xf]
        %v414 = vld [vmem:[%s382] sm:$0xf]
        %v415 = vld [vmem:[%s382 + $0x4] sm:$0xf]
        %v416 = vld [vmem:[%s382 + $0x8] sm:$0xf]
        %v417 = vld [vmem:[%s382 + $0xc] sm:$0xf]
        %v418 = vld [vmem:[%s391] sm:$0xf]
        %v419 = vld [vmem:[%s391 + $0x4] sm:$0xf]
        %v420 = vld [vmem:[%s391 + $0x8] sm:$0xf]
        %v421 = vld [vmem:[%s391 + $0xc] sm:$0xf]
        %v422 = vld [vmem:[%s399] sm:$0xf]
        %v423 = vld [vmem:[%s399 + $0x4] sm:$0xf]
        %v424 = vld [vmem:[%s399 + $0x8] sm:$0xf]
        %v425 = vld [vmem:[%s399 + $0xc] sm:$0xf]
        %v426 = vld [vmem:[%s399 + $0x10] sm:$0xf]
        %v427 = vld [vmem:[%s399 + $0x14] sm:$0xf]
        %v428 = vld [vmem:[%s399 + $0x18] sm:$0xf]
        %v429 = vld [vmem:[%s399 + $0x1c] sm:$0xf]
        %v430 = vld [vmem:[%s399 + $0x20] sm:$0xf]
        %v431 = vld [vmem:[%s399 + $0x24] sm:$0xf]
        %v432 = vld [vmem:[%s399 + $0x28] sm:$0xf]
        %v433 = vld [vmem:[%s399 + $0x2c] sm:$0xf]
        %v434 = vld [vmem:[%s399 + $0x30] sm:$0xf]
        %v435 = vld [vmem:[%s399 + $0x34] sm:$0xf]
        %v436 = vld [vmem:[%s399 + $0x38] sm:$0xf]
        %v437 = vld [vmem:[%s399 + $0x3c] sm:$0xf]
        %v438 = vld [vmem:[%s394] sm:$0x1]
        %v439 = vld [vmem:[%s386] sm:$0xff]
        %v440 = vld [vmem:[#allocation2] sm:$0xff]
        %v441 = vld [vmem:[#allocation2 + $0x8] sm:$0xff]
        %v442 = vpack.c.bf16 %v441, %v440
        %v447 = vunpack.c.l.b16 %v410
        %v448 = vunpack.c.l.b16 %v411
        %v449 = vunpack.c.l.b16 %v412
        %v450 = vunpack.c.l.b16 %v413
        %v451 = vpack.c.b16 %v448, %v447
        %v452 = vpack.c.b16 %v450, %v449
        %453 = vrot.lane.b32.xlu0 %v451, 96
        %v454 = vpop.permute.xlu0 %453
        %455 = vrot.lane.b32.xlu0 %v452, 96
        %v456 = vpop.permute.xlu0 %455
        %vm459 = vcmask 261120
        %v461 = vsel %vm459, %v442, 0
        %463 = vmatprep.subr.bf16.mxu0 0
        %464 = vmatpush1.bf16.msra.mxu0 %v454
        %465 = vmatprep.subr.bf16.mxu0 0
        %466 = vmatpush1.bf16.msra.mxu0 %v456
        %467 = vmatprep.subr.bf16.mxu0 0
        %468 = vmatpush1.bf16.msra.mxu0 0
        %469 = vmatprep.subr.bf16.mxu0 0
        %470 = vmatpush1.bf16.msra.mxu0 0
        %471 = vmatprep.subr.bf16.mxu0 0
        %472 = vmatpush1.bf16.msra.mxu0 0
        %473 = vmatprep.subr.bf16.mxu0 0
        %474 = vmatpush1.bf16.msra.mxu0 0
        %475 = vmatprep.subr.bf16.mxu0 0
        %476 = vmatpush1.bf16.msra.mxu0 0
        %477 = vmatprep.subr.bf16.mxu0 0
        %478 = vmatpush1.bf16.msra.mxu0 0
        %479 = vmatprep.subr.bf16.mxu0 0
        %480 = vmatpush1.bf16.msra.mxu0 0
        %481 = vmatprep.subr.bf16.mxu0 0
        %482 = vmatpush1.bf16.msra.mxu0 0
        %483 = vmatprep.subr.bf16.mxu0 0
        %484 = vmatpush1.bf16.msra.mxu0 0
        %485 = vmatprep.subr.bf16.mxu0 0
        %486 = vmatpush1.bf16.msra.mxu0 0
        %487 = vmatprep.subr.bf16.mxu0 0
        %488 = vmatpush1.bf16.msra.mxu0 0
        %489 = vmatprep.subr.bf16.mxu0 0
        %490 = vmatpush1.bf16.msra.mxu0 0
        %491 = vmatprep.subr.bf16.mxu0 0
        %492 = vmatpush1.bf16.msra.mxu0 0
        %493 = vmatprep.subr.bf16.mxu0 0
        %494 = vmatpush1.bf16.msra.mxu0 0
        %495 = vmatprep.mubr.bf16.mxu0 0
        %496 = vmatmul.mubr.bf16.gmra.mrb[0].mxu0 %v461
        %v497 = vpop.f32.mrb[0].mxu0
        %v498 = vadd.f32 0.0, %v497
        %v499 = vpop.f32.mrb[0].mxu0
        %v500 = vpop.f32.mrb[0].mxu0
        %v501 = vadd.f32 0.0, %v500
        %v502 = vpop.f32.mrb[0].mxu0
        %503 = vdwg.mxu0
        %v504 = vpack.c.bf16 %v501, %v498
        %506 = vrot.lane.b32.xlu0 %v504, 120
        %v507 = vpop.permute.xlu0 %506
        %508 = vrot.lane.b32.xlu0 %v504, 112
        %v509 = vpop.permute.xlu0 %508
        %510 = vrot.lane.b32.xlu0 %v504, 104
        %v511 = vpop.permute.xlu0 %510
        %v514 = vpack.i.b16 %v507, %v504
        %v516 = vshrl.u32 %v504, 16
        %v517 = vshrl.u32 %v507, 16
        %v518 = vpack.i.b16 %v517, %v516
        %v522 = vpack.i.b16 %v511, %v509
        %v524 = vshrl.u32 %v509, 16
        %v525 = vshrl.u32 %v511, 16
        %v526 = vpack.i.b16 %v525, %v524
        %v529 = vpack.i.b16 0, 0
        %v531 = vshrl.u32 0, 16
        %v532 = vpack.i.b16 %v531, %v531
        %v534 = vcombine.high %v514, %v529
        %v536 = vunpack.c.l.s4 1983009808
        %v537 = vunpack.c.0.s8 %v536
        %v538 = vlaneseq
        %v539 = vshrl.u32 %v538, 7
        %v540 = vsub.s32 %v537, %v539
        %v541 = vrot.slane %v514, %v540
        %v543 = vunpack.c.l.s4 1983009808
        %v544 = vunpack.c.0.s8 %v543
        %v545 = vlaneseq
        %v546 = vshrl.u32 %v545, 7
        %v547 = vsub.s32 %v544, %v546
        %v548 = vrot.slane %v534, %v547
        %v549 = vcombine.high %v522, %v529
        %v551 = vunpack.c.l.s4 1983009808
        %v552 = vunpack.c.0.s8 %v551
        %v553 = vlaneseq
        %v554 = vshrl.u32 %v553, 7
        %v555 = vsub.s32 %v552, %v554
        %v556 = vrot.slane %v522, %v555
        %v558 = vunpack.c.l.s4 1983009808
        %v559 = vunpack.c.0.s8 %v558
        %v560 = vlaneseq
        %v561 = vshrl.u32 %v560, 7
        %v562 = vsub.s32 %v559, %v561
        %v563 = vrot.slane %v549, %v562
        %v564 = vcombine.low %v541, %v556
        %v565 = vcombine.high %v541, %v556
        %v567 = vunpack.c.l.s4 1934713408
        %v568 = vunpack.c.0.s8 %v567
        %v569 = vlaneseq
        %v570 = vshrl.u32 %v569, 7
        %v571 = vsub.s32 %v568, %v570
        %v572 = vrot.slane %v564, %v571
        %v574 = vunpack.c.l.s4 1934713408
        %v575 = vunpack.c.0.s8 %v574
        %v576 = vlaneseq
        %v577 = vshrl.u32 %v576, 7
        %v578 = vsub.s32 %v575, %v577
        %v579 = vrot.slane %v565, %v578
        %v580 = vcombine.low %v548, %v563
        %v581 = vcombine.high %v548, %v563
        %v583 = vunpack.c.l.s4 1934713408
        %v584 = vunpack.c.0.s8 %v583
        %v585 = vlaneseq
        %v586 = vshrl.u32 %v585, 7
        %v587 = vsub.s32 %v584, %v586
        %v588 = vrot.slane %v580, %v587
        %v590 = vunpack.c.l.s4 1934713408
        %v591 = vunpack.c.0.s8 %v590
        %v592 = vlaneseq
        %v593 = vshrl.u32 %v592, 7
        %v594 = vsub.s32 %v591, %v593
        %v595 = vrot.slane %v581, %v594
        %v596 = vcombine.high %v572, 0
        %v597 = vcombine.high %v579, 0
        %v598 = vcombine.high %v588, 0
        %v599 = vcombine.high %v595, 0
        %v600 = vcombine.high %v518, %v532
        %v602 = vunpack.c.l.s4 1983009808
        %v603 = vunpack.c.0.s8 %v602
        %v604 = vlaneseq
        %v605 = vshrl.u32 %v604, 7
        %v606 = vsub.s32 %v603, %v605
        %v607 = vrot.slane %v518, %v606
        %v609 = vunpack.c.l.s4 1983009808
        %v610 = vunpack.c.0.s8 %v609
        %v611 = vlaneseq
        %v612 = vshrl.u32 %v611, 7
        %v613 = vsub.s32 %v610, %v612
        %v614 = vrot.slane %v600, %v613
        %v615 = vcombine.high %v526, %v532
        %v617 = vunpack.c.l.s4 1983009808
        %v618 = vunpack.c.0.s8 %v617
        %v619 = vlaneseq
        %v620 = vshrl.u32 %v619, 7
        %v621 = vsub.s32 %v618, %v620
        %v622 = vrot.slane %v526, %v621
        %v624 = vunpack.c.l.s4 1983009808
        %v625 = vunpack.c.0.s8 %v624
        %v626 = vlaneseq
        %v627 = vshrl.u32 %v626, 7
        %v628 = vsub.s32 %v625, %v627
        %v629 = vrot.slane %v615, %v628
        %v630 = vcombine.low %v607, %v622
        %v631 = vcombine.high %v607, %v622
        %v633 = vunpack.c.l.s4 1934713408
        %v634 = vunpack.c.0.s8 %v633
        %v635 = vlaneseq
        %v636 = vshrl.u32 %v635, 7
        %v637 = vsub.s32 %v634, %v636
        %v638 = vrot.slane %v630, %v637
        %v640 = vunpack.c.l.s4 1934713408
        %v641 = vunpack.c.0.s8 %v640
        %v642 = vlaneseq
        %v643 = vshrl.u32 %v642, 7
        %v644 = vsub.s32 %v641, %v643
        %v645 = vrot.slane %v631, %v644
        %v646 = vcombine.low %v614, %v629
        %v647 = vcombine.high %v614, %v629
        %v649 = vunpack.c.l.s4 1934713408
        %v650 = vunpack.c.0.s8 %v649
        %v651 = vlaneseq
        %v652 = vshrl.u32 %v651, 7
        %v653 = vsub.s32 %v650, %v652
        %v654 = vrot.slane %v646, %v653
        %v656 = vunpack.c.l.s4 1934713408
        %v657 = vunpack.c.0.s8 %v656
        %v658 = vlaneseq
        %v659 = vshrl.u32 %v658, 7
        %v660 = vsub.s32 %v657, %v659
        %v661 = vrot.slane %v647, %v660
        %v662 = vcombine.high %v638, 0
        %v663 = vcombine.high %v645, 0
        %v664 = vcombine.high %v654, 0
        %v665 = vcombine.high %v661, 0
        %v666 = vcombine.low %v572, %v579
        %v668 = vunpack.c.l.s4 1983009808
        %v669 = vunpack.c.0.s8 %v668
        %v670 = vlaneseq
        %v671 = vshrl.u32 %v670, 7
        %v672 = vsub.s32 %v669, %v671
        %v673 = vrot.slane %v666, %v672
        %v674 = vcombine.low %v596, %v597
        %v676 = vunpack.c.l.s4 1983009808
        %v677 = vunpack.c.0.s8 %v676
        %v678 = vlaneseq
        %v679 = vshrl.u32 %v678, 7
        %v680 = vsub.s32 %v677, %v679
        %v681 = vrot.slane %v674, %v680
        %v682 = vcombine.low %v588, %v595
        %v684 = vunpack.c.l.s4 1983009808
        %v685 = vunpack.c.0.s8 %v684
        %v686 = vlaneseq
        %v687 = vshrl.u32 %v686, 7
        %v688 = vsub.s32 %v685, %v687
        %v689 = vrot.slane %v682, %v688
        %v690 = vcombine.low %v598, %v599
        %v692 = vunpack.c.l.s4 1983009808
        %v693 = vunpack.c.0.s8 %v692
        %v694 = vlaneseq
        %v695 = vshrl.u32 %v694, 7
        %v696 = vsub.s32 %v693, %v695
        %v697 = vrot.slane %v690, %v696
        %v698 = vcombine.low %v673, %v681
        %v700 = vunpack.c.l.s4 1934713408
        %v701 = vunpack.c.0.s8 %v700
        %v702 = vlaneseq
        %v703 = vshrl.u32 %v702, 7
        %v704 = vsub.s32 %v701, %v703
        %v705 = vrot.slane %v698, %v704
        %v706 = vcombine.low %v689, %v697
        %v708 = vunpack.c.l.s4 1934713408
        %v709 = vunpack.c.0.s8 %v708
        %v710 = vlaneseq
        %v711 = vshrl.u32 %v710, 7
        %v712 = vsub.s32 %v709, %v711
        %v713 = vrot.slane %v706, %v712
        %v714 = vcombine.low %v705, %v713
        %v715 = vcombine.high %v705, %v713
        %v716 = vcombine.low %v638, %v645
        %v718 = vunpack.c.l.s4 1983009808
        %v719 = vunpack.c.0.s8 %v718
        %v720 = vlaneseq
        %v721 = vshrl.u32 %v720, 7
        %v722 = vsub.s32 %v719, %v721
        %v723 = vrot.slane %v716, %v722
        %v724 = vcombine.low %v662, %v663
        %v726 = vunpack.c.l.s4 1983009808
        %v727 = vunpack.c.0.s8 %v726
        %v728 = vlaneseq
        %v729 = vshrl.u32 %v728, 7
        %v730 = vsub.s32 %v727, %v729
        %v731 = vrot.slane %v724, %v730
        %v732 = vcombine.low %v654, %v661
        %v734 = vunpack.c.l.s4 1983009808
        %v735 = vunpack.c.0.s8 %v734
        %v736 = vlaneseq
        %v737 = vshrl.u32 %v736, 7
        %v738 = vsub.s32 %v735, %v737
        %v739 = vrot.slane %v732, %v738
        %v740 = vcombine.low %v664, %v665
        %v742 = vunpack.c.l.s4 1983009808
        %v743 = vunpack.c.0.s8 %v742
        %v744 = vlaneseq
        %v745 = vshrl.u32 %v744, 7
        %v746 = vsub.s32 %v743, %v745
        %v747 = vrot.slane %v740, %v746
        %v748 = vcombine.low %v723, %v731
        %v750 = vunpack.c.l.s4 1934713408
        %v751 = vunpack.c.0.s8 %v750
        %v752 = vlaneseq
        %v753 = vshrl.u32 %v752, 7
        %v754 = vsub.s32 %v751, %v753
        %v755 = vrot.slane %v748, %v754
        %v756 = vcombine.low %v739, %v747
        %v758 = vunpack.c.l.s4 1934713408
        %v759 = vunpack.c.0.s8 %v758
        %v760 = vlaneseq
        %v761 = vshrl.u32 %v760, 7
        %v762 = vsub.s32 %v759, %v761
        %v763 = vrot.slane %v756, %v762
        %v764 = vcombine.low %v755, %v763
        %v765 = vcombine.high %v755, %v763
        %v768 = vpack.i.b16 %v764, %v714
        %v769 = vshrl.u32 %v714, 16
        %v770 = vshrl.u32 %v764, 16
        %v771 = vpack.i.b16 %v770, %v769
        %v774 = vpack.i.b16 %v765, %v715
        %v775 = vshrl.u32 %v715, 16
        %v776 = vshrl.u32 %v765, 16
        %v777 = vpack.i.b16 %v776, %v775
        %778 = vrot.lane.b32.xlu0 %v504, 96
        %v779 = vpop.permute.xlu0 %778
        %780 = vrot.lane.b32.xlu0 %v507, 96
        %v781 = vpop.permute.xlu0 %780
        %782 = vrot.lane.b32.xlu0 %v509, 96
        %v783 = vpop.permute.xlu0 %782
        %784 = vrot.lane.b32.xlu0 %v511, 96
        %v785 = vpop.permute.xlu0 %784
        %v788 = vpack.i.b16 %v781, %v779
        %v790 = vshrl.u32 %v779, 16
        %v791 = vshrl.u32 %v781, 16
        %v792 = vpack.i.b16 %v791, %v790
        %v796 = vpack.i.b16 %v785, %v783
        %v798 = vshrl.u32 %v783, 16
        %v799 = vshrl.u32 %v785, 16
        %v800 = vpack.i.b16 %v799, %v798
        %v802 = vcombine.high %v788, %v529
        %v804 = vunpack.c.l.s4 1983009808
        %v805 = vunpack.c.0.s8 %v804
        %v806 = vlaneseq
        %v807 = vshrl.u32 %v806, 7
        %v808 = vsub.s32 %v805, %v807
        %v809 = vrot.slane %v788, %v808
        %v811 = vunpack.c.l.s4 1983009808
        %v812 = vunpack.c.0.s8 %v811
        %v813 = vlaneseq
        %v814 = vshrl.u32 %v813, 7
        %v815 = vsub.s32 %v812, %v814
        %v816 = vrot.slane %v802, %v815
        %v817 = vcombine.high %v796, %v529
        %v819 = vunpack.c.l.s4 1983009808
        %v820 = vunpack.c.0.s8 %v819
        %v821 = vlaneseq
        %v822 = vshrl.u32 %v821, 7
        %v823 = vsub.s32 %v820, %v822
        %v824 = vrot.slane %v796, %v823
        %v826 = vunpack.c.l.s4 1983009808
        %v827 = vunpack.c.0.s8 %v826
        %v828 = vlaneseq
        %v829 = vshrl.u32 %v828, 7
        %v830 = vsub.s32 %v827, %v829
        %v831 = vrot.slane %v817, %v830
        %v832 = vcombine.low %v809, %v824
        %v833 = vcombine.high %v809, %v824
        %v835 = vunpack.c.l.s4 1934713408
        %v836 = vunpack.c.0.s8 %v835
        %v837 = vlaneseq
        %v838 = vshrl.u32 %v837, 7
        %v839 = vsub.s32 %v836, %v838
        %v840 = vrot.slane %v832, %v839
        %v842 = vunpack.c.l.s4 1934713408
        %v843 = vunpack.c.0.s8 %v842
        %v844 = vlaneseq
        %v845 = vshrl.u32 %v844, 7
        %v846 = vsub.s32 %v843, %v845
        %v847 = vrot.slane %v833, %v846
        %v848 = vcombine.low %v816, %v831
        %v849 = vcombine.high %v816, %v831
        %v851 = vunpack.c.l.s4 1934713408
        %v852 = vunpack.c.0.s8 %v851
        %v853 = vlaneseq
        %v854 = vshrl.u32 %v853, 7
        %v855 = vsub.s32 %v852, %v854
        %v856 = vrot.slane %v848, %v855
        %v858 = vunpack.c.l.s4 1934713408
        %v859 = vunpack.c.0.s8 %v858
        %v860 = vlaneseq
        %v861 = vshrl.u32 %v860, 7
        %v862 = vsub.s32 %v859, %v861
        %v863 = vrot.slane %v849, %v862
        %v864 = vcombine.high %v840, 0
        %v865 = vcombine.high %v847, 0
        %v866 = vcombine.high %v856, 0
        %v867 = vcombine.high %v863, 0
        %v868 = vcombine.high %v792, %v532
        %v870 = vunpack.c.l.s4 1983009808
        %v871 = vunpack.c.0.s8 %v870
        %v872 = vlaneseq
        %v873 = vshrl.u32 %v872, 7
        %v874 = vsub.s32 %v871, %v873
        %v875 = vrot.slane %v792, %v874
        %v877 = vunpack.c.l.s4 1983009808
        %v878 = vunpack.c.0.s8 %v877
        %v879 = vlaneseq
        %v880 = vshrl.u32 %v879, 7
        %v881 = vsub.s32 %v878, %v880
        %v882 = vrot.slane %v868, %v881
        %v883 = vcombine.high %v800, %v532
        %v885 = vunpack.c.l.s4 1983009808
        %v886 = vunpack.c.0.s8 %v885
        %v887 = vlaneseq
        %v888 = vshrl.u32 %v887, 7
        %v889 = vsub.s32 %v886, %v888
        %v890 = vrot.slane %v800, %v889
        %v892 = vunpack.c.l.s4 1983009808
        %v893 = vunpack.c.0.s8 %v892
        %v894 = vlaneseq
        %v895 = vshrl.u32 %v894, 7
        %v896 = vsub.s32 %v893, %v895
        %v897 = vrot.slane %v883, %v896
        %v898 = vcombine.low %v875, %v890
        %v899 = vcombine.high %v875, %v890
        %v901 = vunpack.c.l.s4 1934713408
        %v902 = vunpack.c.0.s8 %v901
        %v903 = vlaneseq
        %v904 = vshrl.u32 %v903, 7
        %v905 = vsub.s32 %v902, %v904
        %v906 = vrot.slane %v898, %v905
        %v908 = vunpack.c.l.s4 1934713408
        %v909 = vunpack.c.0.s8 %v908
        %v910 = vlaneseq
        %v911 = vshrl.u32 %v910, 7
        %v912 = vsub.s32 %v909, %v911
        %v913 = vrot.slane %v899, %v912
        %v914 = vcombine.low %v882, %v897
        %v915 = vcombine.high %v882, %v897
        %v917 = vunpack.c.l.s4 1934713408
        %v918 = vunpack.c.0.s8 %v917
        %v919 = vlaneseq
        %v920 = vshrl.u32 %v919, 7
        %v921 = vsub.s32 %v918, %v920
        %v922 = vrot.slane %v914, %v921
        %v924 = vunpack.c.l.s4 1934713408
        %v925 = vunpack.c.0.s8 %v924
        %v926 = vlaneseq
        %v927 = vshrl.u32 %v926, 7
        %v928 = vsub.s32 %v925, %v927
        %v929 = vrot.slane %v915, %v928
        %v930 = vcombine.high %v906, 0
        %v931 = vcombine.high %v913, 0
        %v932 = vcombine.high %v922, 0
        %v933 = vcombine.high %v929, 0
        %v934 = vcombine.low %v840, %v847
        %v936 = vunpack.c.l.s4 1983009808
        %v937 = vunpack.c.0.s8 %v936
        %v938 = vlaneseq
        %v939 = vshrl.u32 %v938, 7
        %v940 = vsub.s32 %v937, %v939
        %v941 = vrot.slane %v934, %v940
        %v942 = vcombine.low %v864, %v865
        %v944 = vunpack.c.l.s4 1983009808
        %v945 = vunpack.c.0.s8 %v944
        %v946 = vlaneseq
        %v947 = vshrl.u32 %v946, 7
        %v948 = vsub.s32 %v945, %v947
        %v949 = vrot.slane %v942, %v948
        %v950 = vcombine.low %v856, %v863
        %v952 = vunpack.c.l.s4 1983009808
        %v953 = vunpack.c.0.s8 %v952
        %v954 = vlaneseq
        %v955 = vshrl.u32 %v954, 7
        %v956 = vsub.s32 %v953, %v955
        %v957 = vrot.slane %v950, %v956
        %v958 = vcombine.low %v866, %v867
        %v960 = vunpack.c.l.s4 1983009808
        %v961 = vunpack.c.0.s8 %v960
        %v962 = vlaneseq
        %v963 = vshrl.u32 %v962, 7
        %v964 = vsub.s32 %v961, %v963
        %v965 = vrot.slane %v958, %v964
        %v966 = vcombine.low %v941, %v949
        %v968 = vunpack.c.l.s4 1934713408
        %v969 = vunpack.c.0.s8 %v968
        %v970 = vlaneseq
        %v971 = vshrl.u32 %v970, 7
        %v972 = vsub.s32 %v969, %v971
        %v973 = vrot.slane %v966, %v972
        %v974 = vcombine.low %v957, %v965
        %v976 = vunpack.c.l.s4 1934713408
        %v977 = vunpack.c.0.s8 %v976
        %v978 = vlaneseq
        %v979 = vshrl.u32 %v978, 7
        %v980 = vsub.s32 %v977, %v979
        %v981 = vrot.slane %v974, %v980
        %v982 = vcombine.low %v973, %v981
        %v983 = vcombine.high %v973, %v981
        %v984 = vcombine.low %v906, %v913
        %v986 = vunpack.c.l.s4 1983009808
        %v987 = vunpack.c.0.s8 %v986
        %v988 = vlaneseq
        %v989 = vshrl.u32 %v988, 7
        %v990 = vsub.s32 %v987, %v989
        %v991 = vrot.slane %v984, %v990
        %v992 = vcombine.low %v930, %v931
        %v994 = vunpack.c.l.s4 1983009808
        %v995 = vunpack.c.0.s8 %v994
        %v996 = vlaneseq
        %v997 = vshrl.u32 %v996, 7
        %v998 = vsub.s32 %v995, %v997
        %v999 = vrot.slane %v992, %v998
        %v1000 = vcombine.low %v922, %v929
        %v1002 = vunpack.c.l.s4 1983009808
        %v1003 = vunpack.c.0.s8 %v1002
        %v1004 = vlaneseq
        %v1005 = vshrl.u32 %v1004, 7
        %v1006 = vsub.s32 %v1003, %v1005
        %v1007 = vrot.slane %v1000, %v1006
        %v1008 = vcombine.low %v932, %v933
        %v1010 = vunpack.c.l.s4 1983009808
        %v1011 = vunpack.c.0.s8 %v1010
        %v1012 = vlaneseq
        %v1013 = vshrl.u32 %v1012, 7
        %v1014 = vsub.s32 %v1011, %v1013
        %v1015 = vrot.slane %v1008, %v1014
        %v1016 = vcombine.low %v991, %v999
        %v1018 = vunpack.c.l.s4 1934713408
        %v1019 = vunpack.c.0.s8 %v1018
        %v1020 = vlaneseq
        %v1021 = vshrl.u32 %v1020, 7
        %v1022 = vsub.s32 %v1019, %v1021
        %v1023 = vrot.slane %v1016, %v1022
        %v1024 = vcombine.low %v1007, %v1015
        %v1026 = vunpack.c.l.s4 1934713408
        %v1027 = vunpack.c.0.s8 %v1026
        %v1028 = vlaneseq
        %v1029 = vshrl.u32 %v1028, 7
        %v1030 = vsub.s32 %v1027, %v1029
        %v1031 = vrot.slane %v1024, %v1030
        %v1032 = vcombine.low %v1023, %v1031
        %v1033 = vcombine.high %v1023, %v1031
        %v1036 = vpack.i.b16 %v1032, %v982
        %v1038 = vshrl.u32 %v982, 16
        %v1039 = vshrl.u32 %v1032, 16
        %v1040 = vpack.i.b16 %v1039, %v1038
        %v1044 = vpack.i.b16 %v1033, %v983
        %v1046 = vshrl.u32 %v983, 16
        %v1047 = vshrl.u32 %v1033, 16
        %v1048 = vpack.i.b16 %v1047, %v1046
        %1052 = vmatprep.subr.bf16.mxu0 0
        %1053 = vmatpush1.bf16.msra.mxu0 %v451
        %1054 = vmatprep.subr.bf16.mxu0 0
        %1055 = vmatpush1.bf16.msra.mxu0 %v452
        %1056 = vmatprep.subr.bf16.mxu0 0
        %1057 = vmatpush1.bf16.msra.mxu0 0
        %1058 = vmatprep.subr.bf16.mxu0 0
        %1059 = vmatpush1.bf16.msra.mxu0 0
        %1060 = vmatprep.subr.bf16.mxu0 0
        %1061 = vmatpush1.bf16.msra.mxu0 0
        %1062 = vmatprep.subr.bf16.mxu0 0
        %1063 = vmatpush1.bf16.msra.mxu0 0
        %1064 = vmatprep.subr.bf16.mxu0 0
        %1065 = vmatpush1.bf16.msra.mxu0 0
        %1066 = vmatprep.subr.bf16.mxu0 0
        %1067 = vmatpush1.bf16.msra.mxu0 0
        %1068 = vmatprep.subr.bf16.mxu0 0
        %1069 = vmatpush1.bf16.msra.mxu0 0
        %1070 = vmatprep.subr.bf16.mxu0 0
        %1071 = vmatpush1.bf16.msra.mxu0 0
        %1072 = vmatprep.subr.bf16.mxu0 0
        %1073 = vmatpush1.bf16.msra.mxu0 0
        %1074 = vmatprep.subr.bf16.mxu0 0
        %1075 = vmatpush1.bf16.msra.mxu0 0
        %1076 = vmatprep.subr.bf16.mxu0 0
        %1077 = vmatpush1.bf16.msra.mxu0 0
        %1078 = vmatprep.subr.bf16.mxu0 0
        %1079 = vmatpush1.bf16.msra.mxu0 0
        %1080 = vmatprep.subr.bf16.mxu0 0
        %1081 = vmatpush1.bf16.msra.mxu0 0
        %1082 = vmatprep.subr.bf16.mxu0 0
        %1083 = vmatpush1.bf16.msra.mxu0 0
        %1084 = vmatprep.mubr.bf16.mxu0 0
        %1085 = vmatmul.mubr.bf16.gmra.mrb[0].mxu0 %v461
        %v1086 = vpop.f32.mrb[0].mxu0
        %v1087 = vadd.f32 0.0, %v1086
        %v1088 = vpop.f32.mrb[0].mxu0
        %v1089 = vpop.f32.mrb[0].mxu0
        %v1090 = vadd.f32 0.0, %v1089
        %v1091 = vpop.f32.mrb[0].mxu0
        %1092 = vdwg.mxu0
        %v1093 = vpack.c.bf16 %v1090, %v1087
        %1095 = vrot.lane.b32.xlu0 %v1093, 120
        %v1096 = vpop.permute.xlu0 %1095
        %1097 = vrot.lane.b32.xlu0 %v1093, 112
        %v1098 = vpop.permute.xlu0 %1097
        %1099 = vrot.lane.b32.xlu0 %v1093, 104
        %v1100 = vpop.permute.xlu0 %1099
        %v1103 = vpack.i.b16 %v1096, %v1093
        %v1105 = vshrl.u32 %v1093, 16
        %v1106 = vshrl.u32 %v1096, 16
        %v1107 = vpack.i.b16 %v1106, %v1105
        %v1111 = vpack.i.b16 %v1100, %v1098
        %v1113 = vshrl.u32 %v1098, 16
        %v1114 = vshrl.u32 %v1100, 16
        %v1115 = vpack.i.b16 %v1114, %v1113
        %v1117 = vcombine.high %v1103, %v529
        %v1119 = vunpack.c.l.s4 1983009808
        %v1120 = vunpack.c.0.s8 %v1119
        %v1121 = vlaneseq
        %v1122 = vshrl.u32 %v1121, 7
        %v1123 = vsub.s32 %v1120, %v1122
        %v1124 = vrot.slane %v1103, %v1123
        %v1126 = vunpack.c.l.s4 1983009808
        %v1127 = vunpack.c.0.s8 %v1126
        %v1128 = vlaneseq
        %v1129 = vshrl.u32 %v1128, 7
        %v1130 = vsub.s32 %v1127, %v1129
        %v1131 = vrot.slane %v1117, %v1130
        %v1132 = vcombine.high %v1111, %v529
        %v1134 = vunpack.c.l.s4 1983009808
        %v1135 = vunpack.c.0.s8 %v1134
        %v1136 = vlaneseq
        %v1137 = vshrl.u32 %v1136, 7
        %v1138 = vsub.s32 %v1135, %v1137
        %v1139 = vrot.slane %v1111, %v1138
        %v1141 = vunpack.c.l.s4 1983009808
        %v1142 = vunpack.c.0.s8 %v1141
        %v1143 = vlaneseq
        %v1144 = vshrl.u32 %v1143, 7
        %v1145 = vsub.s32 %v1142, %v1144
        %v1146 = vrot.slane %v1132, %v1145
        %v1147 = vcombine.low %v1124, %v1139
        %v1148 = vcombine.high %v1124, %v1139
        %v1150 = vunpack.c.l.s4 1934713408
        %v1151 = vunpack.c.0.s8 %v1150
        %v1152 = vlaneseq
        %v1153 = vshrl.u32 %v1152, 7
        %v1154 = vsub.s32 %v1151, %v1153
        %v1155 = vrot.slane %v1147, %v1154
        %v1157 = vunpack.c.l.s4 1934713408
        %v1158 = vunpack.c.0.s8 %v1157
        %v1159 = vlaneseq
        %v1160 = vshrl.u32 %v1159, 7
        %v1161 = vsub.s32 %v1158, %v1160
        %v1162 = vrot.slane %v1148, %v1161
        %v1163 = vcombine.low %v1131, %v1146
        %v1164 = vcombine.high %v1131, %v1146
        %v1166 = vunpack.c.l.s4 1934713408
        %v1167 = vunpack.c.0.s8 %v1166
        %v1168 = vlaneseq
        %v1169 = vshrl.u32 %v1168, 7
        %v1170 = vsub.s32 %v1167, %v1169
        %v1171 = vrot.slane %v1163, %v1170
        %v1173 = vunpack.c.l.s4 1934713408
        %v1174 = vunpack.c.0.s8 %v1173
        %v1175 = vlaneseq
        %v1176 = vshrl.u32 %v1175, 7
        %v1177 = vsub.s32 %v1174, %v1176
        %v1178 = vrot.slane %v1164, %v1177
        %v1179 = vcombine.high %v1155, 0
        %v1180 = vcombine.high %v1162, 0
        %v1181 = vcombine.high %v1171, 0
        %v1182 = vcombine.high %v1178, 0
        %v1183 = vcombine.high %v1107, %v532
        %v1185 = vunpack.c.l.s4 1983009808
        %v1186 = vunpack.c.0.s8 %v1185
        %v1187 = vlaneseq
        %v1188 = vshrl.u32 %v1187, 7
        %v1189 = vsub.s32 %v1186, %v1188
        %v1190 = vrot.slane %v1107, %v1189
        %v1192 = vunpack.c.l.s4 1983009808
        %v1193 = vunpack.c.0.s8 %v1192
        %v1194 = vlaneseq
        %v1195 = vshrl.u32 %v1194, 7
        %v1196 = vsub.s32 %v1193, %v1195
        %v1197 = vrot.slane %v1183, %v1196
        %v1198 = vcombine.high %v1115, %v532
        %v1200 = vunpack.c.l.s4 1983009808
        %v1201 = vunpack.c.0.s8 %v1200
        %v1202 = vlaneseq
        %v1203 = vshrl.u32 %v1202, 7
        %v1204 = vsub.s32 %v1201, %v1203
        %v1205 = vrot.slane %v1115, %v1204
        %v1207 = vunpack.c.l.s4 1983009808
        %v1208 = vunpack.c.0.s8 %v1207
        %v1209 = vlaneseq
        %v1210 = vshrl.u32 %v1209, 7
        %v1211 = vsub.s32 %v1208, %v1210
        %v1212 = vrot.slane %v1198, %v1211
        %v1213 = vcombine.low %v1190, %v1205
        %v1214 = vcombine.high %v1190, %v1205
        %v1216 = vunpack.c.l.s4 1934713408
        %v1217 = vunpack.c.0.s8 %v1216
        %v1218 = vlaneseq
        %v1219 = vshrl.u32 %v1218, 7
        %v1220 = vsub.s32 %v1217, %v1219
        %v1221 = vrot.slane %v1213, %v1220
        %v1223 = vunpack.c.l.s4 1934713408
        %v1224 = vunpack.c.0.s8 %v1223
        %v1225 = vlaneseq
        %v1226 = vshrl.u32 %v1225, 7
        %v1227 = vsub.s32 %v1224, %v1226
        %v1228 = vrot.slane %v1214, %v1227
        %v1229 = vcombine.low %v1197, %v1212
        %v1230 = vcombine.high %v1197, %v1212
        %v1232 = vunpack.c.l.s4 1934713408
        %v1233 = vunpack.c.0.s8 %v1232
        %v1234 = vlaneseq
        %v1235 = vshrl.u32 %v1234, 7
        %v1236 = vsub.s32 %v1233, %v1235
        %v1237 = vrot.slane %v1229, %v1236
        %v1239 = vunpack.c.l.s4 1934713408
        %v1240 = vunpack.c.0.s8 %v1239
        %v1241 = vlaneseq
        %v1242 = vshrl.u32 %v1241, 7
        %v1243 = vsub.s32 %v1240, %v1242
        %v1244 = vrot.slane %v1230, %v1243
        %v1245 = vcombine.high %v1221, 0
        %v1246 = vcombine.high %v1228, 0
        %v1247 = vcombine.high %v1237, 0
        %v1248 = vcombine.high %v1244, 0
        %v1249 = vcombine.low %v1155, %v1162
        %v1251 = vunpack.c.l.s4 1983009808
        %v1252 = vunpack.c.0.s8 %v1251
        %v1253 = vlaneseq
        %v1254 = vshrl.u32 %v1253, 7
        %v1255 = vsub.s32 %v1252, %v1254
        %v1256 = vrot.slane %v1249, %v1255
        %v1257 = vcombine.low %v1179, %v1180
        %v1259 = vunpack.c.l.s4 1983009808
        %v1260 = vunpack.c.0.s8 %v1259
        %v1261 = vlaneseq
        %v1262 = vshrl.u32 %v1261, 7
        %v1263 = vsub.s32 %v1260, %v1262
        %v1264 = vrot.slane %v1257, %v1263
        %v1265 = vcombine.low %v1171, %v1178
        %v1267 = vunpack.c.l.s4 1983009808
        %v1268 = vunpack.c.0.s8 %v1267
        %v1269 = vlaneseq
        %v1270 = vshrl.u32 %v1269, 7
        %v1271 = vsub.s32 %v1268, %v1270
        %v1272 = vrot.slane %v1265, %v1271
        %v1273 = vcombine.low %v1181, %v1182
        %v1275 = vunpack.c.l.s4 1983009808
        %v1276 = vunpack.c.0.s8 %v1275
        %v1277 = vlaneseq
        %v1278 = vshrl.u32 %v1277, 7
        %v1279 = vsub.s32 %v1276, %v1278
        %v1280 = vrot.slane %v1273, %v1279
        %v1281 = vcombine.low %v1256, %v1264
        %v1283 = vunpack.c.l.s4 1934713408
        %v1284 = vunpack.c.0.s8 %v1283
        %v1285 = vlaneseq
        %v1286 = vshrl.u32 %v1285, 7
        %v1287 = vsub.s32 %v1284, %v1286
        %v1288 = vrot.slane %v1281, %v1287
        %v1289 = vcombine.low %v1272, %v1280
        %v1291 = vunpack.c.l.s4 1934713408
        %v1292 = vunpack.c.0.s8 %v1291
        %v1293 = vlaneseq
        %v1294 = vshrl.u32 %v1293, 7
        %v1295 = vsub.s32 %v1292, %v1294
        %v1296 = vrot.slane %v1289, %v1295
        %v1297 = vcombine.low %v1288, %v1296
        %v1298 = vcombine.high %v1288, %v1296
        %v1299 = vcombine.low %v1221, %v1228
        %v1301 = vunpack.c.l.s4 1983009808
        %v1302 = vunpack.c.0.s8 %v1301
        %v1303 = vlaneseq
        %v1304 = vshrl.u32 %v1303, 7
        %v1305 = vsub.s32 %v1302, %v1304
        %v1306 = vrot.slane %v1299, %v1305
        %v1307 = vcombine.low %v1245, %v1246
        %v1309 = vunpack.c.l.s4 1983009808
        %v1310 = vunpack.c.0.s8 %v1309
        %v1311 = vlaneseq
        %v1312 = vshrl.u32 %v1311, 7
        %v1313 = vsub.s32 %v1310, %v1312
        %v1314 = vrot.slane %v1307, %v1313
        %v1315 = vcombine.low %v1237, %v1244
        %v1317 = vunpack.c.l.s4 1983009808
        %v1318 = vunpack.c.0.s8 %v1317
        %v1319 = vlaneseq
        %v1320 = vshrl.u32 %v1319, 7
        %v1321 = vsub.s32 %v1318, %v1320
        %v1322 = vrot.slane %v1315, %v1321
        %v1323 = vcombine.low %v1247, %v1248
        %v1325 = vunpack.c.l.s4 1983009808
        %v1326 = vunpack.c.0.s8 %v1325
        %v1327 = vlaneseq
        %v1328 = vshrl.u32 %v1327, 7
        %v1329 = vsub.s32 %v1326, %v1328
        %v1330 = vrot.slane %v1323, %v1329
        %v1331 = vcombine.low %v1306, %v1314
        %v1333 = vunpack.c.l.s4 1934713408
        %v1334 = vunpack.c.0.s8 %v1333
        %v1335 = vlaneseq
        %v1336 = vshrl.u32 %v1335, 7
        %v1337 = vsub.s32 %v1334, %v1336
        %v1338 = vrot.slane %v1331, %v1337
        %v1339 = vcombine.low %v1322, %v1330
        %v1341 = vunpack.c.l.s4 1934713408
        %v1342 = vunpack.c.0.s8 %v1341
        %v1343 = vlaneseq
        %v1344 = vshrl.u32 %v1343, 7
        %v1345 = vsub.s32 %v1342, %v1344
        %v1346 = vrot.slane %v1339, %v1345
        %v1347 = vcombine.low %v1338, %v1346
        %v1348 = vcombine.high %v1338, %v1346
        %v1351 = vpack.i.b16 %v1347, %v1297
        %v1352 = vshrl.u32 %v1297, 16
        %v1353 = vshrl.u32 %v1347, 16
        %v1354 = vpack.i.b16 %v1353, %v1352
        %v1357 = vpack.i.b16 %v1348, %v1298
        %v1358 = vshrl.u32 %v1298, 16
        %v1359 = vshrl.u32 %v1348, 16
        %v1360 = vpack.i.b16 %v1359, %v1358
        %vm1361 = vcmask 64512
        %v1363 = vsel %vm1361, %v1351, 0
        %v1366 = vsel %vm1361, %v768, 0
        %1368 = vmatprep.subr.bf16.mxu0 0
        %1369 = vmatpush1.bf16.xpose.msra.mxu0 %v1366
        %1370 = vmatprep.subr.bf16.mxu0 0
        %1371 = vmatpush1.bf16.xpose.msra.mxu0 0
        %1372 = vmatprep.subr.bf16.mxu0 0
        %1373 = vmatpush1.bf16.xpose.msra.mxu0 0
        %1374 = vmatprep.subr.bf16.mxu0 0
        %1375 = vmatpush1.bf16.xpose.msra.mxu0 0
        %1376 = vmatprep.subr.bf16.mxu0 0
        %1377 = vmatpush1.bf16.xpose.msra.mxu0 0
        %1378 = vmatprep.subr.bf16.mxu0 0
        %1379 = vmatpush1.bf16.xpose.msra.mxu0 0
        %1380 = vmatprep.subr.bf16.mxu0 0
        %1381 = vmatpush1.bf16.xpose.msra.mxu0 0
        %1382 = vmatprep.subr.bf16.mxu0 0
        %1383 = vmatpush1.bf16.xpose.msra.mxu0 0
        %1384 = vmatprep.subr.bf16.mxu0 0
        %1385 = vmatpush1.bf16.xpose.msra.mxu0 0
        %1386 = vmatprep.subr.bf16.mxu0 0
        %1387 = vmatpush1.bf16.xpose.msra.mxu0 0
        %1388 = vmatprep.subr.bf16.mxu0 0
        %1389 = vmatpush1.bf16.xpose.msra.mxu0 0
        %1390 = vmatprep.subr.bf16.mxu0 0
        %1391 = vmatpush1.bf16.xpose.msra.mxu0 0
        %1392 = vmatprep.subr.bf16.mxu0 0
        %1393 = vmatpush1.bf16.xpose.msra.mxu0 0
        %1394 = vmatprep.subr.bf16.mxu0 0
        %1395 = vmatpush1.bf16.xpose.msra.mxu0 0
        %1396 = vmatprep.subr.bf16.mxu0 0
        %1397 = vmatpush1.bf16.xpose.msra.mxu0 0
        %1398 = vmatprep.subr.bf16.mxu0 0
        %1399 = vmatpush1.bf16.xpose.msra.mxu0 0
        %1400 = vmatprep.mubr.bf16.mxu0 0
        %1401 = vmatmul.mubr.bf16.gmra.mrb[0].mxu0 %v1363
        %v1402 = vpop.f32.mrb[0].mxu0
        %v1403 = vadd.f32 0.0, %v1402
        %v1404 = vpop.f32.mrb[0].mxu0
        %v1405 = vpop.f32.mrb[0].mxu0
        %v1406 = vadd.f32 0.0, %v1405
        %v1407 = vpop.f32.mrb[0].mxu0
        %1408 = vdwg.mxu0
        %v1410 = vsel %vm1361, %v1354, 0
        %v1413 = vsel %vm1361, %v771, 0
        %1415 = vmatprep.subr.bf16.mxu0 0
        %1416 = vmatpush1.bf16.xpose.msra.mxu0 %v1413
        %1417 = vmatprep.subr.bf16.mxu0 0
        %1418 = vmatpush1.bf16.xpose.msra.mxu0 0
        %1419 = vmatprep.subr.bf16.mxu0 0
        %1420 = vmatpush1.bf16.xpose.msra.mxu0 0
        %1421 = vmatprep.subr.bf16.mxu0 0
        %1422 = vmatpush1.bf16.xpose.msra.mxu0 0
        %1423 = vmatprep.subr.bf16.mxu0 0
        %1424 = vmatpush1.bf16.xpose.msra.mxu0 0
        %1425 = vmatprep.subr.bf16.mxu0 0
        %1426 = vmatpush1.bf16.xpose.msra.mxu0 0
        %1427 = vmatprep.subr.bf16.mxu0 0
        %1428 = vmatpush1.bf16.xpose.msra.mxu0 0
        %1429 = vmatprep.subr.bf16.mxu0 0
        %1430 = vmatpush1.bf16.xpose.msra.mxu0 0
        %1431 = vmatprep.subr.bf16.mxu0 0
        %1432 = vmatpush1.bf16.xpose.msra.mxu0 0
        %1433 = vmatprep.subr.bf16.mxu0 0
        %1434 = vmatpush1.bf16.xpose.msra.mxu0 0
        %1435 = vmatprep.subr.bf16.mxu0 0
        %1436 = vmatpush1.bf16.xpose.msra.mxu0 0
        %1437 = vmatprep.subr.bf16.mxu0 0
        %1438 = vmatpush1.bf16.xpose.msra.mxu0 0
        %1439 = vmatprep.subr.bf16.mxu0 0
        %1440 = vmatpush1.bf16.xpose.msra.mxu0 0
        %1441 = vmatprep.subr.bf16.mxu0 0
        %1442 = vmatpush1.bf16.xpose.msra.mxu0 0
        %1443 = vmatprep.subr.bf16.mxu0 0
        %1444 = vmatpush1.bf16.xpose.msra.mxu0 0
        %1445 = vmatprep.subr.bf16.mxu0 0
        %1446 = vmatpush1.bf16.xpose.msra.mxu0 0
        %1447 = vmatprep.mubr.bf16.mxu0 0
        %1448 = vmatmul.mubr.bf16.gmra.mrb[0].mxu0 %v1410
        %v1449 = vpop.f32.mrb[0].mxu0
        %v1450 = vadd.f32 0.0, %v1449
        %v1451 = vpop.f32.mrb[0].mxu0
        %v1452 = vpop.f32.mrb[0].mxu0
        %v1453 = vadd.f32 0.0, %v1452
        %v1454 = vpop.f32.mrb[0].mxu0
        %1455 = vdwg.mxu0
        %v1457 = vsel %vm1361, %v1357, 0
        %v1460 = vsel %vm1361, %v774, 0
        %1462 = vmatprep.subr.bf16.mxu0 0
        %1463 = vmatpush1.bf16.xpose.msra.mxu0 %v1460
        %1464 = vmatprep.subr.bf16.mxu0 0
        %1465 = vmatpush1.bf16.xpose.msra.mxu0 0
        %1466 = vmatprep.subr.bf16.mxu0 0
        %1467 = vmatpush1.bf16.xpose.msra.mxu0 0
        %1468 = vmatprep.subr.bf16.mxu0 0
        %1469 = vmatpush1.bf16.xpose.msra.mxu0 0
        %1470 = vmatprep.subr.bf16.mxu0 0
        %1471 = vmatpush1.bf16.xpose.msra.mxu0 0
        %1472 = vmatprep.subr.bf16.mxu0 0
        %1473 = vmatpush1.bf16.xpose.msra.mxu0 0
        %1474 = vmatprep.subr.bf16.mxu0 0
        %1475 = vmatpush1.bf16.xpose.msra.mxu0 0
        %1476 = vmatprep.subr.bf16.mxu0 0
        %1477 = vmatpush1.bf16.xpose.msra.mxu0 0
        %1478 = vmatprep.subr.bf16.mxu0 0
        %1479 = vmatpush1.bf16.xpose.msra.mxu0 0
        %1480 = vmatprep.subr.bf16.mxu0 0
        %1481 = vmatpush1.bf16.xpose.msra.mxu0 0
        %1482 = vmatprep.subr.bf16.mxu0 0
        %1483 = vmatpush1.bf16.xpose.msra.mxu0 0
        %1484 = vmatprep.subr.bf16.mxu0 0
        %1485 = vmatpush1.bf16.xpose.msra.mxu0 0
        %1486 = vmatprep.subr.bf16.mxu0 0
        %1487 = vmatpush1.bf16.xpose.msra.mxu0 0
        %1488 = vmatprep.subr.bf16.mxu0 0
        %1489 = vmatpush1.bf16.xpose.msra.mxu0 0
        %1490 = vmatprep.subr.bf16.mxu0 0
        %1491 = vmatpush1.bf16.xpose.msra.mxu0 0
        %1492 = vmatprep.subr.bf16.mxu0 0
        %1493 = vmatpush1.bf16.xpose.msra.mxu0 0
        %1494 = vmatprep.mubr.bf16.mxu0 0
        %1495 = vmatmul.mubr.bf16.gmra.mrb[0].mxu0 %v1457
        %v1496 = vpop.f32.mrb[0].mxu0
        %v1497 = vadd.f32 0.0, %v1496
        %v1498 = vpop.f32.mrb[0].mxu0
        %v1499 = vpop.f32.mrb[0].mxu0
        %v1500 = vadd.f32 0.0, %v1499
        %v1501 = vpop.f32.mrb[0].mxu0
        %1502 = vdwg.mxu0
        %v1504 = vsel %vm1361, %v1360, 0
        %v1507 = vsel %vm1361, %v777, 0
        %1509 = vmatprep.subr.bf16.mxu0 0
        %1510 = vmatpush1.bf16.xpose.msra.mxu0 %v1507
        %1511 = vmatprep.subr.bf16.mxu0 0
        %1512 = vmatpush1.bf16.xpose.msra.mxu0 0
        %1513 = vmatprep.subr.bf16.mxu0 0
        %1514 = vmatpush1.bf16.xpose.msra.mxu0 0
        %1515 = vmatprep.subr.bf16.mxu0 0
        %1516 = vmatpush1.bf16.xpose.msra.mxu0 0
        %1517 = vmatprep.subr.bf16.mxu0 0
        %1518 = vmatpush1.bf16.xpose.msra.mxu0 0
        %1519 = vmatprep.subr.bf16.mxu0 0
        %1520 = vmatpush1.bf16.xpose.msra.mxu0 0
        %1521 = vmatprep.subr.bf16.mxu0 0
        %1522 = vmatpush1.bf16.xpose.msra.mxu0 0
        %1523 = vmatprep.subr.bf16.mxu0 0
        %1524 = vmatpush1.bf16.xpose.msra.mxu0 0
        %1525 = vmatprep.subr.bf16.mxu0 0
        %1526 = vmatpush1.bf16.xpose.msra.mxu0 0
        %1527 = vmatprep.subr.bf16.mxu0 0
        %1528 = vmatpush1.bf16.xpose.msra.mxu0 0
        %1529 = vmatprep.subr.bf16.mxu0 0
        %1530 = vmatpush1.bf16.xpose.msra.mxu0 0
        %1531 = vmatprep.subr.bf16.mxu0 0
        %1532 = vmatpush1.bf16.xpose.msra.mxu0 0
        %1533 = vmatprep.subr.bf16.mxu0 0
        %1534 = vmatpush1.bf16.xpose.msra.mxu0 0
        %1535 = vmatprep.subr.bf16.mxu0 0
        %1536 = vmatpush1.bf16.xpose.msra.mxu0 0
        %1537 = vmatprep.subr.bf16.mxu0 0
        %1538 = vmatpush1.bf16.xpose.msra.mxu0 0
        %1539 = vmatprep.subr.bf16.mxu0 0
        %1540 = vmatpush1.bf16.xpose.msra.mxu0 0
        %1541 = vmatprep.mubr.bf16.mxu0 0
        %1542 = vmatmul.mubr.bf16.gmra.mrb[0].mxu0 %v1504
        %v1543 = vpop.f32.mrb[0].mxu0
        %v1544 = vadd.f32 0.0, %v1543
        %v1545 = vpop.f32.mrb[0].mxu0
        %v1546 = vpop.f32.mrb[0].mxu0
        %v1547 = vadd.f32 0.0, %v1546
        %v1548 = vpop.f32.mrb[0].mxu0
        %1549 = vdwg.mxu0
        %v1550 = vlaneseq
        %v1551 = vshrl.u32 %v1550, 7
        %v1552 = vadd.s32 %v1551, 8
        %v1553 = vlaneseq
        %v1554 = vand.u32 %v1553, 127
        %vm1555 = vcmp.ge.s32.totalorder %v1551, %v1554
        %vm1556 = vcmp.ge.s32.totalorder %v1552, %v1554
        %v1557 = vsel %vm1555, 1, 0
        %v1558 = vsel %vm1556, 1, 0
        %vm1559 = vcmp.eq.s32.totalorder %v1557, 1
        %vm1560 = vcmp.eq.s32.totalorder %v1558, 1
        %v1561 = vsel %vm1559, %v1403, -1e+30
        %v1562 = vsel %vm1560, %v1406, -1e+30
        %v1563 = vsel %vm1559, %v1450, -1e+30
        %v1564 = vsel %vm1560, %v1453, -1e+30
        %v1565 = vsel %vm1559, %v1497, -1e+30
        %v1566 = vsel %vm1560, %v1500, -1e+30
        %v1567 = vsel %vm1559, %v1544, -1e+30
        %v1568 = vsel %vm1560, %v1547, -1e+30
        %vm1569 = vcmask 130048
        %v1570 = vsel %vm1569, %v1561, -inf
        %1571 = vmax.xlane.f32.xlu0 %v1570
        %v1572 = vpop.xlane.xlu0 %1571
        %v1573 = vsel %vm1569, %v1562, -inf
        %1574 = vmax.xlane.f32.xlu0 %v1573
        %v1575 = vpop.xlane.xlu0 %1574
        %v1576 = vsel %vm1569, %v1563, -inf
        %1577 = vmax.xlane.f32.xlu0 %v1576
        %v1578 = vpop.xlane.xlu0 %1577
        %v1579 = vsel %vm1569, %v1564, -inf
        %1580 = vmax.xlane.f32.xlu0 %v1579
        %v1581 = vpop.xlane.xlu0 %1580
        %v1582 = vsel %vm1569, %v1565, -inf
        %1583 = vmax.xlane.f32.xlu0 %v1582
        %v1584 = vpop.xlane.xlu0 %1583
        %v1585 = vsel %vm1569, %v1566, -inf
        %1586 = vmax.xlane.f32.xlu0 %v1585
        %v1587 = vpop.xlane.xlu0 %1586
        %v1588 = vsel %vm1569, %v1567, -inf
        %1589 = vmax.xlane.f32.xlu0 %v1588
        %v1590 = vpop.xlane.xlu0 %1589
        %v1591 = vsel %vm1569, %v1568, -inf
        %1592 = vmax.xlane.f32.xlu0 %v1591
        %v1593 = vpop.xlane.xlu0 %1592
        %v1594 = vsub.f32 %v1561, %v1572
        %v1595 = vsub.f32 %v1562, %v1575
        %v1596 = vsub.f32 %v1563, %v1578
        %v1597 = vsub.f32 %v1564, %v1581
        %v1598 = vsub.f32 %v1565, %v1584
        %v1599 = vsub.f32 %v1566, %v1587
        %v1600 = vsub.f32 %v1567, %v1590
        %v1601 = vsub.f32 %v1568, %v1593
        %v1602 = vmul.f32 %v1594, 1.442695
        %v1603 = vpow.pop %v1602
        %v1604 = vmul.f32 %v1595, 1.442695
        %v1605 = vpow.pop %v1604
        %v1606 = vmul.f32 %v1596, 1.442695
        %v1607 = vpow.pop %v1606
        %v1608 = vmul.f32 %v1597, 1.442695
        %v1609 = vpow.pop %v1608
        %v1610 = vmul.f32 %v1598, 1.442695
        %v1611 = vpow.pop %v1610
        %v1612 = vmul.f32 %v1599, 1.442695
        %v1613 = vpow.pop %v1612
        %v1614 = vmul.f32 %v1600, 1.442695
        %v1615 = vpow.pop %v1614
        %v1616 = vmul.f32 %v1601, 1.442695
        %v1617 = vpow.pop %v1616
        %v1618 = vsel %vm1569, %v1603, 0.0
        %1619 = vadd.xlane.f32.xlu0 %v1618
        %v1620 = vpop.xlane.xlu0 %1619
        %v1621 = vsel %vm1569, %v1605, 0.0
        %1622 = vadd.xlane.f32.xlu0 %v1621
        %v1623 = vpop.xlane.xlu0 %1622
        %v1624 = vsel %vm1569, %v1607, 0.0
        %1625 = vadd.xlane.f32.xlu0 %v1624
        %v1626 = vpop.xlane.xlu0 %1625
        %v1627 = vsel %vm1569, %v1609, 0.0
        %1628 = vadd.xlane.f32.xlu0 %v1627
        %v1629 = vpop.xlane.xlu0 %1628
        %v1630 = vsel %vm1569, %v1611, 0.0
        %1631 = vadd.xlane.f32.xlu0 %v1630
        %v1632 = vpop.xlane.xlu0 %1631
        %v1633 = vsel %vm1569, %v1613, 0.0
        %1634 = vadd.xlane.f32.xlu0 %v1633
        %v1635 = vpop.xlane.xlu0 %1634
        %v1636 = vsel %vm1569, %v1615, 0.0
        %1637 = vadd.xlane.f32.xlu0 %v1636
        %v1638 = vpop.xlane.xlu0 %1637
        %v1639 = vsel %vm1569, %v1617, 0.0
        %1640 = vadd.xlane.f32.xlu0 %v1639
        %v1641 = vpop.xlane.xlu0 %1640
        %v1642 = vrcp.pop %v1620
        %v1643 = vrcp.pop %v1623
        %v1644 = vrcp.pop %v1626
        %v1645 = vrcp.pop %v1629
        %v1646 = vrcp.pop %v1632
        %v1647 = vrcp.pop %v1635
        %v1648 = vrcp.pop %v1638
        %v1649 = vrcp.pop %v1641
        %v1650 = vmul.f32 %v1603, %v1642
        %v1651 = vmul.f32 %v1605, %v1643
        %v1652 = vmul.f32 %v1607, %v1644
        %v1653 = vmul.f32 %v1609, %v1645
        %v1654 = vmul.f32 %v1611, %v1646
        %v1655 = vmul.f32 %v1613, %v1647
        %v1656 = vmul.f32 %v1615, %v1648
        %v1657 = vmul.f32 %v1617, %v1649
        %v1658 = vpack.c.bf16 %v1651, %v1650
        %v1659 = vpack.c.bf16 %v1653, %v1652
        %v1660 = vpack.c.bf16 %v1655, %v1654
        %v1661 = vpack.c.bf16 %v1657, %v1656
        %v1663 = vsel %vm1569, %v1658, 0
        %1665 = vmatprep.subr.bf16.mxu0 0
        %1666 = vmatpush1.bf16.msra.mxu0 %v1036
        %1667 = vmatprep.subr.bf16.mxu0 0
        %1668 = vmatpush1.bf16.msra.mxu0 0
        %1669 = vmatprep.subr.bf16.mxu0 0
        %1670 = vmatpush1.bf16.msra.mxu0 0
        %1671 = vmatprep.subr.bf16.mxu0 0
        %1672 = vmatpush1.bf16.msra.mxu0 0
        %1673 = vmatprep.subr.bf16.mxu0 0
        %1674 = vmatpush1.bf16.msra.mxu0 0
        %1675 = vmatprep.subr.bf16.mxu0 0
        %1676 = vmatpush1.bf16.msra.mxu0 0
        %1677 = vmatprep.subr.bf16.mxu0 0
        %1678 = vmatpush1.bf16.msra.mxu0 0
        %1679 = vmatprep.subr.bf16.mxu0 0
        %1680 = vmatpush1.bf16.msra.mxu0 0
        %1681 = vmatprep.subr.bf16.mxu0 0
        %1682 = vmatpush1.bf16.msra.mxu0 0
        %1683 = vmatprep.subr.bf16.mxu0 0
        %1684 = vmatpush1.bf16.msra.mxu0 0
        %1685 = vmatprep.subr.bf16.mxu0 0
        %1686 = vmatpush1.bf16.msra.mxu0 0
        %1687 = vmatprep.subr.bf16.mxu0 0
        %1688 = vmatpush1.bf16.msra.mxu0 0
        %1689 = vmatprep.subr.bf16.mxu0 0
        %1690 = vmatpush1.bf16.msra.mxu0 0
        %1691 = vmatprep.subr.bf16.mxu0 0
        %1692 = vmatpush1.bf16.msra.mxu0 0
        %1693 = vmatprep.subr.bf16.mxu0 0
        %1694 = vmatpush1.bf16.msra.mxu0 0
        %1695 = vmatprep.subr.bf16.mxu0 0
        %1696 = vmatpush1.bf16.msra.mxu0 0
        %1697 = vmatprep.mubr.bf16.mxu0 0
        %1698 = vmatmul.mubr.bf16.gmra.mrb[0].mxu0 %v1663
        %v1699 = vpop.f32.mrb[0].mxu0
        %v1700 = vadd.f32 0.0, %v1699
        %v1701 = vpop.f32.mrb[0].mxu0
        %v1702 = vpop.f32.mrb[0].mxu0
        %v1703 = vadd.f32 0.0, %v1702
        %v1704 = vpop.f32.mrb[0].mxu0
        %1705 = vdwg.mxu0
        %v1707 = vsel %vm1569, %v1659, 0
        %1709 = vmatprep.subr.bf16.mxu0 0
        %1710 = vmatpush1.bf16.msra.mxu0 %v1040
        %1711 = vmatprep.subr.bf16.mxu0 0
        %1712 = vmatpush1.bf16.msra.mxu0 0
        %1713 = vmatprep.subr.bf16.mxu0 0
        %1714 = vmatpush1.bf16.msra.mxu0 0
        %1715 = vmatprep.subr.bf16.mxu0 0
        %1716 = vmatpush1.bf16.msra.mxu0 0
        %1717 = vmatprep.subr.bf16.mxu0 0
        %1718 = vmatpush1.bf16.msra.mxu0 0
        %1719 = vmatprep.subr.bf16.mxu0 0
        %1720 = vmatpush1.bf16.msra.mxu0 0
        %1721 = vmatprep.subr.bf16.mxu0 0
        %1722 = vmatpush1.bf16.msra.mxu0 0
        %1723 = vmatprep.subr.bf16.mxu0 0
        %1724 = vmatpush1.bf16.msra.mxu0 0
        %1725 = vmatprep.subr.bf16.mxu0 0
        %1726 = vmatpush1.bf16.msra.mxu0 0
        %1727 = vmatprep.subr.bf16.mxu0 0
        %1728 = vmatpush1.bf16.msra.mxu0 0
        %1729 = vmatprep.subr.bf16.mxu0 0
        %1730 = vmatpush1.bf16.msra.mxu0 0
        %1731 = vmatprep.subr.bf16.mxu0 0
        %1732 = vmatpush1.bf16.msra.mxu0 0
        %1733 = vmatprep.subr.bf16.mxu0 0
        %1734 = vmatpush1.bf16.msra.mxu0 0
        %1735 = vmatprep.subr.bf16.mxu0 0
        %1736 = vmatpush1.bf16.msra.mxu0 0
        %1737 = vmatprep.subr.bf16.mxu0 0
        %1738 = vmatpush1.bf16.msra.mxu0 0
        %1739 = vmatprep.subr.bf16.mxu0 0
        %1740 = vmatpush1.bf16.msra.mxu0 0
        %1741 = vmatprep.mubr.bf16.mxu0 0
        %1742 = vmatmul.mubr.bf16.gmra.mrb[0].mxu0 %v1707
        %v1743 = vpop.f32.mrb[0].mxu0
        %v1744 = vadd.f32 0.0, %v1743
        %v1745 = vpop.f32.mrb[0].mxu0
        %v1746 = vpop.f32.mrb[0].mxu0
        %v1747 = vadd.f32 0.0, %v1746
        %v1748 = vpop.f32.mrb[0].mxu0
        %1749 = vdwg.mxu0
        %v1751 = vsel %vm1569, %v1660, 0
        %1753 = vmatprep.subr.bf16.mxu0 0
        %1754 = vmatpush1.bf16.msra.mxu0 %v1044
        %1755 = vmatprep.subr.bf16.mxu0 0
        %1756 = vmatpush1.bf16.msra.mxu0 0
        %1757 = vmatprep.subr.bf16.mxu0 0
        %1758 = vmatpush1.bf16.msra.mxu0 0
        %1759 = vmatprep.subr.bf16.mxu0 0
        %1760 = vmatpush1.bf16.msra.mxu0 0
        %1761 = vmatprep.subr.bf16.mxu0 0
        %1762 = vmatpush1.bf16.msra.mxu0 0
        %1763 = vmatprep.subr.bf16.mxu0 0
        %1764 = vmatpush1.bf16.msra.mxu0 0
        %1765 = vmatprep.subr.bf16.mxu0 0
        %1766 = vmatpush1.bf16.msra.mxu0 0
        %1767 = vmatprep.subr.bf16.mxu0 0
        %1768 = vmatpush1.bf16.msra.mxu0 0
        %1769 = vmatprep.subr.bf16.mxu0 0
        %1770 = vmatpush1.bf16.msra.mxu0 0
        %1771 = vmatprep.subr.bf16.mxu0 0
        %1772 = vmatpush1.bf16.msra.mxu0 0
        %1773 = vmatprep.subr.bf16.mxu0 0
        %1774 = vmatpush1.bf16.msra.mxu0 0
        %1775 = vmatprep.subr.bf16.mxu0 0
        %1776 = vmatpush1.bf16.msra.mxu0 0
        %1777 = vmatprep.subr.bf16.mxu0 0
        %1778 = vmatpush1.bf16.msra.mxu0 0
        %1779 = vmatprep.subr.bf16.mxu0 0
        %1780 = vmatpush1.bf16.msra.mxu0 0
        %1781 = vmatprep.subr.bf16.mxu0 0
        %1782 = vmatpush1.bf16.msra.mxu0 0
        %1783 = vmatprep.subr.bf16.mxu0 0
        %1784 = vmatpush1.bf16.msra.mxu0 0
        %1785 = vmatprep.mubr.bf16.mxu0 0
        %1786 = vmatmul.mubr.bf16.gmra.mrb[0].mxu0 %v1751
        %v1787 = vpop.f32.mrb[0].mxu0
        %v1788 = vadd.f32 0.0, %v1787
        %v1789 = vpop.f32.mrb[0].mxu0
        %v1790 = vpop.f32.mrb[0].mxu0
        %v1791 = vadd.f32 0.0, %v1790
        %v1792 = vpop.f32.mrb[0].mxu0
        %1793 = vdwg.mxu0
        %v1795 = vsel %vm1569, %v1661, 0
        %1797 = vmatprep.subr.bf16.mxu0 0
        %1798 = vmatpush1.bf16.msra.mxu0 %v1048
        %1799 = vmatprep.subr.bf16.mxu0 0
        %1800 = vmatpush1.bf16.msra.mxu0 0
        %1801 = vmatprep.subr.bf16.mxu0 0
        %1802 = vmatpush1.bf16.msra.mxu0 0
        %1803 = vmatprep.subr.bf16.mxu0 0
        %1804 = vmatpush1.bf16.msra.mxu0 0
        %1805 = vmatprep.subr.bf16.mxu0 0
        %1806 = vmatpush1.bf16.msra.mxu0 0
        %1807 = vmatprep.subr.bf16.mxu0 0
        %1808 = vmatpush1.bf16.msra.mxu0 0
        %1809 = vmatprep.subr.bf16.mxu0 0
        %1810 = vmatpush1.bf16.msra.mxu0 0
        %1811 = vmatprep.subr.bf16.mxu0 0
        %1812 = vmatpush1.bf16.msra.mxu0 0
        %1813 = vmatprep.subr.bf16.mxu0 0
        %1814 = vmatpush1.bf16.msra.mxu0 0
        %1815 = vmatprep.subr.bf16.mxu0 0
        %1816 = vmatpush1.bf16.msra.mxu0 0
        %1817 = vmatprep.subr.bf16.mxu0 0
        %1818 = vmatpush1.bf16.msra.mxu0 0
        %1819 = vmatprep.subr.bf16.mxu0 0
        %1820 = vmatpush1.bf16.msra.mxu0 0
        %1821 = vmatprep.subr.bf16.mxu0 0
        %1822 = vmatpush1.bf16.msra.mxu0 0
        %1823 = vmatprep.subr.bf16.mxu0 0
        %1824 = vmatpush1.bf16.msra.mxu0 0
        %1825 = vmatprep.subr.bf16.mxu0 0
        %1826 = vmatpush1.bf16.msra.mxu0 0
        %1827 = vmatprep.subr.bf16.mxu0 0
        %1828 = vmatpush1.bf16.msra.mxu0 0
        %1829 = vmatprep.mubr.bf16.mxu0 0
        %1830 = vmatmul.mubr.bf16.gmra.mrb[0].mxu0 %v1795
        %v1831 = vpop.f32.mrb[0].mxu0
        %v1832 = vadd.f32 0.0, %v1831
        %v1833 = vpop.f32.mrb[0].mxu0
        %v1834 = vpop.f32.mrb[0].mxu0
        %v1835 = vadd.f32 0.0, %v1834
        %v1836 = vpop.f32.mrb[0].mxu0
        %1837 = vdwg.mxu0
        %v1838 = vcombine.low %v1700, %v1788
        %v1839 = vcombine.high %v1700, %v1788
        %v1841 = vunpack.c.l.s4 1983009808
        %v1842 = vunpack.c.0.s8 %v1841
        %v1843 = vlaneseq
        %v1844 = vshrl.u32 %v1843, 7
        %v1845 = vsub.s32 %v1842, %v1844
        %v1846 = vrot.slane %v1838, %v1845
        %v1848 = vunpack.c.l.s4 1983009808
        %v1849 = vunpack.c.0.s8 %v1848
        %v1850 = vlaneseq
        %v1851 = vshrl.u32 %v1850, 7
        %v1852 = vsub.s32 %v1849, %v1851
        %v1853 = vrot.slane %v1839, %v1852
        %v1854 = vcombine.low %v1744, %v1832
        %v1855 = vcombine.high %v1744, %v1832
        %v1857 = vunpack.c.l.s4 1983009808
        %v1858 = vunpack.c.0.s8 %v1857
        %v1859 = vlaneseq
        %v1860 = vshrl.u32 %v1859, 7
        %v1861 = vsub.s32 %v1858, %v1860
        %v1862 = vrot.slane %v1854, %v1861
        %v1864 = vunpack.c.l.s4 1983009808
        %v1865 = vunpack.c.0.s8 %v1864
        %v1866 = vlaneseq
        %v1867 = vshrl.u32 %v1866, 7
        %v1868 = vsub.s32 %v1865, %v1867
        %v1869 = vrot.slane %v1855, %v1868
        %v1870 = vcombine.low %v1846, %v1862
        %v1871 = vcombine.high %v1846, %v1862
        %v1873 = vunpack.c.l.s4 1934713408
        %v1874 = vunpack.c.0.s8 %v1873
        %v1875 = vlaneseq
        %v1876 = vshrl.u32 %v1875, 7
        %v1877 = vsub.s32 %v1874, %v1876
        %v1878 = vrot.slane %v1870, %v1877
        %v1880 = vunpack.c.l.s4 1934713408
        %v1881 = vunpack.c.0.s8 %v1880
        %v1882 = vlaneseq
        %v1883 = vshrl.u32 %v1882, 7
        %v1884 = vsub.s32 %v1881, %v1883
        %v1885 = vrot.slane %v1871, %v1884
        %v1886 = vcombine.low %v1853, %v1869
        %v1887 = vcombine.high %v1853, %v1869
        %v1889 = vunpack.c.l.s4 1934713408
        %v1890 = vunpack.c.0.s8 %v1889
        %v1891 = vlaneseq
        %v1892 = vshrl.u32 %v1891, 7
        %v1893 = vsub.s32 %v1890, %v1892
        %v1894 = vrot.slane %v1886, %v1893
        %v1896 = vunpack.c.l.s4 1934713408
        %v1897 = vunpack.c.0.s8 %v1896
        %v1898 = vlaneseq
        %v1899 = vshrl.u32 %v1898, 7
        %v1900 = vsub.s32 %v1897, %v1899
        %v1901 = vrot.slane %v1887, %v1900
        %v1902 = vcombine.high %v1878, 0.0
        %v1903 = vcombine.high %v1885, 0.0
        %v1904 = vcombine.high %v1894, 0.0
        %v1905 = vcombine.high %v1901, 0.0
        %v1906 = vcombine.low %v1703, %v1791
        %v1907 = vcombine.high %v1703, %v1791
        %v1909 = vunpack.c.l.s4 1983009808
        %v1910 = vunpack.c.0.s8 %v1909
        %v1911 = vlaneseq
        %v1912 = vshrl.u32 %v1911, 7
        %v1913 = vsub.s32 %v1910, %v1912
        %v1914 = vrot.slane %v1906, %v1913
        %v1916 = vunpack.c.l.s4 1983009808
        %v1917 = vunpack.c.0.s8 %v1916
        %v1918 = vlaneseq
        %v1919 = vshrl.u32 %v1918, 7
        %v1920 = vsub.s32 %v1917, %v1919
        %v1921 = vrot.slane %v1907, %v1920
        %v1922 = vcombine.low %v1747, %v1835
        %v1923 = vcombine.high %v1747, %v1835
        %v1925 = vunpack.c.l.s4 1983009808
        %v1926 = vunpack.c.0.s8 %v1925
        %v1927 = vlaneseq
        %v1928 = vshrl.u32 %v1927, 7
        %v1929 = vsub.s32 %v1926, %v1928
        %v1930 = vrot.slane %v1922, %v1929
        %v1932 = vunpack.c.l.s4 1983009808
        %v1933 = vunpack.c.0.s8 %v1932
        %v1934 = vlaneseq
        %v1935 = vshrl.u32 %v1934, 7
        %v1936 = vsub.s32 %v1933, %v1935
        %v1937 = vrot.slane %v1923, %v1936
        %v1938 = vcombine.low %v1914, %v1930
        %v1939 = vcombine.high %v1914, %v1930
        %v1941 = vunpack.c.l.s4 1934713408
        %v1942 = vunpack.c.0.s8 %v1941
        %v1943 = vlaneseq
        %v1944 = vshrl.u32 %v1943, 7
        %v1945 = vsub.s32 %v1942, %v1944
        %v1946 = vrot.slane %v1938, %v1945
        %v1948 = vunpack.c.l.s4 1934713408
        %v1949 = vunpack.c.0.s8 %v1948
        %v1950 = vlaneseq
        %v1951 = vshrl.u32 %v1950, 7
        %v1952 = vsub.s32 %v1949, %v1951
        %v1953 = vrot.slane %v1939, %v1952
        %v1954 = vcombine.low %v1921, %v1937
        %v1955 = vcombine.high %v1921, %v1937
        %v1957 = vunpack.c.l.s4 1934713408
        %v1958 = vunpack.c.0.s8 %v1957
        %v1959 = vlaneseq
        %v1960 = vshrl.u32 %v1959, 7
        %v1961 = vsub.s32 %v1958, %v1960
        %v1962 = vrot.slane %v1954, %v1961
        %v1964 = vunpack.c.l.s4 1934713408
        %v1965 = vunpack.c.0.s8 %v1964
        %v1966 = vlaneseq
        %v1967 = vshrl.u32 %v1966, 7
        %v1968 = vsub.s32 %v1965, %v1967
        %v1969 = vrot.slane %v1955, %v1968
        %v1970 = vcombine.high %v1946, 0.0
        %v1971 = vcombine.high %v1953, 0.0
        %v1972 = vcombine.high %v1962, 0.0
        %v1973 = vcombine.high %v1969, 0.0
        %v1974 = vcombine.low %v1878, %v1885
        %v1976 = vunpack.c.l.s4 1983009808
        %v1977 = vunpack.c.0.s8 %v1976
        %v1978 = vlaneseq
        %v1979 = vshrl.u32 %v1978, 7
        %v1980 = vsub.s32 %v1977, %v1979
        %v1981 = vrot.slane %v1974, %v1980
        %v1982 = vcombine.low %v1902, %v1903
        %v1984 = vunpack.c.l.s4 1983009808
        %v1985 = vunpack.c.0.s8 %v1984
        %v1986 = vlaneseq
        %v1987 = vshrl.u32 %v1986, 7
        %v1988 = vsub.s32 %v1985, %v1987
        %v1989 = vrot.slane %v1982, %v1988
        %v1990 = vcombine.low %v1894, %v1901
        %v1992 = vunpack.c.l.s4 1983009808
        %v1993 = vunpack.c.0.s8 %v1992
        %v1994 = vlaneseq
        %v1995 = vshrl.u32 %v1994, 7
        %v1996 = vsub.s32 %v1993, %v1995
        %v1997 = vrot.slane %v1990, %v1996
        %v1998 = vcombine.low %v1904, %v1905
        %v2000 = vunpack.c.l.s4 1983009808
        %v2001 = vunpack.c.0.s8 %v2000
        %v2002 = vlaneseq
        %v2003 = vshrl.u32 %v2002, 7
        %v2004 = vsub.s32 %v2001, %v2003
        %v2005 = vrot.slane %v1998, %v2004
        %v2006 = vcombine.low %v1981, %v1989
        %v2007 = vcombine.high %v1981, %v1989
        %v2009 = vunpack.c.l.s4 1934713408
        %v2010 = vunpack.c.0.s8 %v2009
        %v2011 = vlaneseq
        %v2012 = vshrl.u32 %v2011, 7
        %v2013 = vsub.s32 %v2010, %v2012
        %v2014 = vrot.slane %v2006, %v2013
        %v2016 = vunpack.c.l.s4 1934713408
        %v2017 = vunpack.c.0.s8 %v2016
        %v2018 = vlaneseq
        %v2019 = vshrl.u32 %v2018, 7
        %v2020 = vsub.s32 %v2017, %v2019
        %v2021 = vrot.slane %v2007, %v2020
        %v2022 = vcombine.low %v1997, %v2005
        %v2023 = vcombine.high %v1997, %v2005
        %v2025 = vunpack.c.l.s4 1934713408
        %v2026 = vunpack.c.0.s8 %v2025
        %v2027 = vlaneseq
        %v2028 = vshrl.u32 %v2027, 7
        %v2029 = vsub.s32 %v2026, %v2028
        %v2030 = vrot.slane %v2022, %v2029
        %v2032 = vunpack.c.l.s4 1934713408
        %v2033 = vunpack.c.0.s8 %v2032
        %v2034 = vlaneseq
        %v2035 = vshrl.u32 %v2034, 7
        %v2036 = vsub.s32 %v2033, %v2035
        %v2037 = vrot.slane %v2023, %v2036
        %v2038 = vcombine.low %v2014, %v2030
        %v2039 = vcombine.high %v2014, %v2030
        %v2040 = vcombine.low %v2021, %v2037
        %v2041 = vcombine.high %v2021, %v2037
        %v2042 = vcombine.low %v1946, %v1953
        %v2044 = vunpack.c.l.s4 1983009808
        %v2045 = vunpack.c.0.s8 %v2044
        %v2046 = vlaneseq
        %v2047 = vshrl.u32 %v2046, 7
        %v2048 = vsub.s32 %v2045, %v2047
        %v2049 = vrot.slane %v2042, %v2048
        %v2050 = vcombine.low %v1970, %v1971
        %v2052 = vunpack.c.l.s4 1983009808
        %v2053 = vunpack.c.0.s8 %v2052
        %v2054 = vlaneseq
        %v2055 = vshrl.u32 %v2054, 7
        %v2056 = vsub.s32 %v2053, %v2055
        %v2057 = vrot.slane %v2050, %v2056
        %v2058 = vcombine.low %v1962, %v1969
        %v2060 = vunpack.c.l.s4 1983009808
        %v2061 = vunpack.c.0.s8 %v2060
        %v2062 = vlaneseq
        %v2063 = vshrl.u32 %v2062, 7
        %v2064 = vsub.s32 %v2061, %v2063
        %v2065 = vrot.slane %v2058, %v2064
        %v2066 = vcombine.low %v1972, %v1973
        %v2068 = vunpack.c.l.s4 1983009808
        %v2069 = vunpack.c.0.s8 %v2068
        %v2070 = vlaneseq
        %v2071 = vshrl.u32 %v2070, 7
        %v2072 = vsub.s32 %v2069, %v2071
        %v2073 = vrot.slane %v2066, %v2072
        %v2074 = vcombine.low %v2049, %v2057
        %v2075 = vcombine.high %v2049, %v2057
        %v2077 = vunpack.c.l.s4 1934713408
        %v2078 = vunpack.c.0.s8 %v2077
        %v2079 = vlaneseq
        %v2080 = vshrl.u32 %v2079, 7
        %v2081 = vsub.s32 %v2078, %v2080
        %v2082 = vrot.slane %v2074, %v2081
        %v2084 = vunpack.c.l.s4 1934713408
        %v2085 = vunpack.c.0.s8 %v2084
        %v2086 = vlaneseq
        %v2087 = vshrl.u32 %v2086, 7
        %v2088 = vsub.s32 %v2085, %v2087
        %v2089 = vrot.slane %v2075, %v2088
        %v2090 = vcombine.low %v2065, %v2073
        %v2091 = vcombine.high %v2065, %v2073
        %v2093 = vunpack.c.l.s4 1934713408
        %v2094 = vunpack.c.0.s8 %v2093
        %v2095 = vlaneseq
        %v2096 = vshrl.u32 %v2095, 7
        %v2097 = vsub.s32 %v2094, %v2096
        %v2098 = vrot.slane %v2090, %v2097
        %v2100 = vunpack.c.l.s4 1934713408
        %v2101 = vunpack.c.0.s8 %v2100
        %v2102 = vlaneseq
        %v2103 = vshrl.u32 %v2102, 7
        %v2104 = vsub.s32 %v2101, %v2103
        %v2105 = vrot.slane %v2091, %v2104
        %v2106 = vcombine.low %v2082, %v2098
        %v2107 = vcombine.high %v2082, %v2098
        %v2108 = vcombine.low %v2089, %v2105
        %v2109 = vcombine.high %v2089, %v2105
        %2112 = vrot.lane.b32.xlu0 %v2039, 8
        %v2113 = vpop.permute.xlu0 %2112
        %2114 = vrot.lane.b32.xlu0 %v2107, 8
        %v2115 = vpop.permute.xlu0 %2114
        %2120 = vrot.lane.b32.xlu0 %v2040, 16
        %v2121 = vpop.permute.xlu0 %2120
        %2122 = vrot.lane.b32.xlu0 %v2108, 16
        %v2123 = vpop.permute.xlu0 %2122
        %2128 = vrot.lane.b32.xlu0 %v2041, 24
        %v2129 = vpop.permute.xlu0 %2128
        %2130 = vrot.lane.b32.xlu0 %v2109, 24
        %v2131 = vpop.permute.xlu0 %2130
        %v2134 = vsel %vm1361, %v2038, %v2113
        %v2135 = vsel %vm1361, %v2106, %v2115
        %v2136 = vsel %vm1569, %v2134, %v2121
        %v2137 = vsel %vm1569, %v2135, %v2123
        %vm2138 = vcmask 195584
        %v2139 = vsel %vm2138, %v2136, %v2129
        %v2140 = vsel %vm2138, %v2137, %v2131
        %v2141 = vpack.c.bf16 %v2140, %v2139
        %v2142 = vlaneseq
        %v2143 = vshrl.u32 %v2142, 7
        %v2144 = vsub.s32 0, %v2143
        %v2145 = vrot.slane %v439, %v2144
        %v2150 = vunpack.c.l.b16 %v414
        %v2151 = vunpack.c.l.b16 %v415
        %v2152 = vunpack.c.l.b16 %v416
        %v2153 = vunpack.c.l.b16 %v417
        %v2154 = vpack.c.b16 %v2151, %v2150
        %v2155 = vpack.c.b16 %v2153, %v2152
        %v2159 = vsel %vm459, %v2141, 0
        %2161 = vmatprep.subr.bf16.mxu0 0
        %2162 = vmatpush1.bf16.msra.mxu0 %v2154
        %2163 = vmatprep.subr.bf16.mxu0 0
        %2164 = vmatpush1.bf16.msra.mxu0 %v2155
        %2165 = vmatprep.subr.bf16.mxu0 0
        %2166 = vmatpush1.bf16.msra.mxu0 0
        %2167 = vmatprep.subr.bf16.mxu0 0
        %2168 = vmatpush1.bf16.msra.mxu0 0
        %2169 = vmatprep.subr.bf16.mxu0 0
        %2170 = vmatpush1.bf16.msra.mxu0 0
        %2171 = vmatprep.subr.bf16.mxu0 0
        %2172 = vmatpush1.bf16.msra.mxu0 0
        %2173 = vmatprep.subr.bf16.mxu0 0
        %2174 = vmatpush1.bf16.msra.mxu0 0
        %2175 = vmatprep.subr.bf16.mxu0 0
        %2176 = vmatpush1.bf16.msra.mxu0 0
        %2177 = vmatprep.subr.bf16.mxu0 0
        %2178 = vmatpush1.bf16.msra.mxu0 0
        %2179 = vmatprep.subr.bf16.mxu0 0
        %2180 = vmatpush1.bf16.msra.mxu0 0
        %2181 = vmatprep.subr.bf16.mxu0 0
        %2182 = vmatpush1.bf16.msra.mxu0 0
        %2183 = vmatprep.subr.bf16.mxu0 0
        %2184 = vmatpush1.bf16.msra.mxu0 0
        %2185 = vmatprep.subr.bf16.mxu0 0
        %2186 = vmatpush1.bf16.msra.mxu0 0
        %2187 = vmatprep.subr.bf16.mxu0 0
        %2188 = vmatpush1.bf16.msra.mxu0 0
        %2189 = vmatprep.subr.bf16.mxu0 0
        %2190 = vmatpush1.bf16.msra.mxu0 0
        %2191 = vmatprep.subr.bf16.mxu0 0
        %2192 = vmatpush1.bf16.msra.mxu0 0
        %2193 = vmatprep.mubr.bf16.mxu0 0
        %2194 = vmatmul.mubr.bf16.gmra.mrb[0].mxu0 %v2159
        %v2195 = vpop.f32.mrb[0].mxu0
        %v2196 = vadd.f32 %v2145, %v2195
        %v2197 = vpop.f32.mrb[0].mxu0
        %v2198 = vpop.f32.mrb[0].mxu0
        %v2199 = vadd.f32 %v2145, %v2198
        %v2200 = vpop.f32.mrb[0].mxu0
        %2201 = vdwg.mxu0
        %v2202 = vadd.f32 %v2196, %v440
        %v2203 = vadd.f32 %v2199, %v441
        %v2204 = vsel %vm459, %v2202, 0.0
        %2205 = vadd.xlane.f32.xlu0 %v2204
        %v2206 = vpop.xlane.xlu0 %2205
        %v2207 = vsel %vm459, %v2203, 0.0
        %2208 = vadd.xlane.f32.xlu0 %v2207
        %v2209 = vpop.xlane.xlu0 %2208
        %v2210 = vrcp.pop 32.0
        %v2211 = vmul.f32 %v2206, %v2210
        %v2212 = vmul.f32 %v2209, %v2210
        %v2213 = vsub.f32 %v2202, %v2211
        %v2214 = vsub.f32 %v2203, %v2212
        %v2215 = vmul.f32 %v2213, %v2213
        %v2216 = vmul.f32 %v2214, %v2214
        %v2217 = vsel %vm459, %v2215, 0.0
        %2218 = vadd.xlane.f32.xlu0 %v2217
        %v2219 = vpop.xlane.xlu0 %2218
        %v2220 = vsel %vm459, %v2216, 0.0
        %2221 = vadd.xlane.f32.xlu0 %v2220
        %v2222 = vpop.xlane.xlu0 %2221
        %v2223 = vmul.f32 %v2219, %v2210
        %v2224 = vmul.f32 %v2222, %v2210
        %v2225 = vadd.f32 %v2223, 1e-05
        %v2226 = vadd.f32 %v2224, 1e-05
        %v2227 = vrsqrt.pop %v2225
        %v2228 = vrsqrt.pop %v2226
        %v2229 = vmul.f32 %v2213, %v2227
        %v2230 = vmul.f32 %v2214, %v2228
        %v2231 = vlaneseq
        %v2232 = vshrl.u32 %v2231, 7
        %v2233 = vsub.s32 1, %v2232
        %v2234 = vrot.slane %v439, %v2233
        %v2235 = vmul.f32 %v2229, %v2234
        %v2236 = vmul.f32 %v2230, %v2234
        %v2237 = vlaneseq
        %v2238 = vshrl.u32 %v2237, 7
        %v2239 = vsub.s32 2, %v2238
        %v2240 = vrot.slane %v439, %v2239
        %v2241 = vadd.f32 %v2235, %v2240
        %v2242 = vadd.f32 %v2236, %v2240
        %v2243 = vpack.c.bf16 %v2242, %v2241
        %v2245 = vlaneseq
        %v2246 = vshrl.u32 %v2245, 7
        %v2247 = vsub.s32 0, %v2246
        %v2248 = vrot.slane %v438, %v2247
        %v2254 = vunpack.c.l.b16 %v418
        %v2255 = vunpack.c.l.b16 %v419
        %v2256 = vunpack.c.l.b16 %v420
        %v2257 = vunpack.c.l.b16 %v421
        %v2258 = vpack.c.b16 %v2255, %v2254
        %v2259 = vpack.c.b16 %v2257, %v2256
        %v2263 = vsel %vm459, %v2243, 0
        %2265 = vmatprep.subr.bf16.mxu0 0
        %2266 = vmatpush1.bf16.msra.mxu0 %v2258
        %2267 = vmatprep.subr.bf16.mxu0 0
        %2268 = vmatpush1.bf16.msra.mxu0 %v2259
        %2269 = vmatprep.subr.bf16.mxu0 0
        %2270 = vmatpush1.bf16.msra.mxu0 0
        %2271 = vmatprep.subr.bf16.mxu0 0
        %2272 = vmatpush1.bf16.msra.mxu0 0
        %2273 = vmatprep.subr.bf16.mxu0 0
        %2274 = vmatpush1.bf16.msra.mxu0 0
        %2275 = vmatprep.subr.bf16.mxu0 0
        %2276 = vmatpush1.bf16.msra.mxu0 0
        %2277 = vmatprep.subr.bf16.mxu0 0
        %2278 = vmatpush1.bf16.msra.mxu0 0
        %2279 = vmatprep.subr.bf16.mxu0 0
        %2280 = vmatpush1.bf16.msra.mxu0 0
        %2281 = vmatprep.subr.bf16.mxu0 0
        %2282 = vmatpush1.bf16.msra.mxu0 0
        %2283 = vmatprep.subr.bf16.mxu0 0
        %2284 = vmatpush1.bf16.msra.mxu0 0
        %2285 = vmatprep.subr.bf16.mxu0 0
        %2286 = vmatpush1.bf16.msra.mxu0 0
        %2287 = vmatprep.subr.bf16.mxu0 0
        %2288 = vmatpush1.bf16.msra.mxu0 0
        %2289 = vmatprep.subr.bf16.mxu0 0
        %2290 = vmatpush1.bf16.msra.mxu0 0
        %2291 = vmatprep.subr.bf16.mxu0 0
        %2292 = vmatpush1.bf16.msra.mxu0 0
        %2293 = vmatprep.subr.bf16.mxu0 0
        %2294 = vmatpush1.bf16.msra.mxu0 0
        %2295 = vmatprep.subr.bf16.mxu0 0
        %2296 = vmatpush1.bf16.msra.mxu0 0
        %2297 = vmatprep.mubr.bf16.mxu0 0
        %2298 = vmatmul.mubr.bf16.gmra.mrb[0].mxu0 %v2263
        %v2299 = vpop.f32.mrb[0].mxu0
        %v2300 = vadd.f32 %v2248, %v2299
        %v2301 = vpop.f32.mrb[0].mxu0
        %v2302 = vpop.f32.mrb[0].mxu0
        %v2303 = vadd.f32 %v2248, %v2302
        %v2304 = vpop.f32.mrb[0].mxu0
        %2305 = vdwg.mxu0
        %v2306 = vmax.f32 %v2300, 0.0
        %v2307 = vmax.f32 %v2303, 0.0
        %v2308 = vpack.c.bf16 %v2307, %v2306
        %v2309 = vlaneseq
        %v2310 = vshrl.u32 %v2309, 7
        %v2311 = vsub.s32 5, %v2310
        %v2312 = vrot.slane %v439, %v2311
        %v2329 = vunpack.c.l.b16 %v422
        %v2330 = vunpack.c.l.b16 %v423
        %v2331 = vunpack.c.l.b16 %v424
        %v2332 = vunpack.c.l.b16 %v425
        %v2333 = vunpack.c.l.b16 %v426
        %v2334 = vunpack.c.l.b16 %v427
        %v2335 = vunpack.c.l.b16 %v428
        %v2336 = vunpack.c.l.b16 %v429
        %v2337 = vunpack.c.l.b16 %v430
        %v2338 = vunpack.c.l.b16 %v431
        %v2339 = vunpack.c.l.b16 %v432
        %v2340 = vunpack.c.l.b16 %v433
        %v2341 = vunpack.c.l.b16 %v434
        %v2342 = vunpack.c.l.b16 %v435
        %v2343 = vunpack.c.l.b16 %v436
        %v2344 = vunpack.c.l.b16 %v437
        %v2345 = vpack.c.b16 %v2330, %v2329
        %v2346 = vpack.c.b16 %v2332, %v2331
        %v2347 = vpack.c.b16 %v2334, %v2333
        %v2348 = vpack.c.b16 %v2336, %v2335
        %v2349 = vpack.c.b16 %v2338, %v2337
        %v2350 = vpack.c.b16 %v2340, %v2339
        %v2351 = vpack.c.b16 %v2342, %v2341
        %v2352 = vpack.c.b16 %v2344, %v2343
        %2361 = vmatprep.subr.bf16.mxu0 0
        %2362 = vmatpush1.bf16.msra.mxu0 %v2345
        %2363 = vmatprep.subr.bf16.mxu0 0
        %2364 = vmatpush1.bf16.msra.mxu0 %v2346
        %2365 = vmatprep.subr.bf16.mxu0 0
        %2366 = vmatpush1.bf16.msra.mxu0 %v2347
        %2367 = vmatprep.subr.bf16.mxu0 0
        %2368 = vmatpush1.bf16.msra.mxu0 %v2348
        %2369 = vmatprep.subr.bf16.mxu0 0
        %2370 = vmatpush1.bf16.msra.mxu0 %v2349
        %2371 = vmatprep.subr.bf16.mxu0 0
        %2372 = vmatpush1.bf16.msra.mxu0 %v2350
        %2373 = vmatprep.subr.bf16.mxu0 0
        %2374 = vmatpush1.bf16.msra.mxu0 %v2351
        %2375 = vmatprep.subr.bf16.mxu0 0
        %2376 = vmatpush1.bf16.msra.mxu0 %v2352
        %2377 = vmatprep.subr.bf16.mxu0 0
        %2378 = vmatpush1.bf16.msra.mxu0 0
        %2379 = vmatprep.subr.bf16.mxu0 0
        %2380 = vmatpush1.bf16.msra.mxu0 0
        %2381 = vmatprep.subr.bf16.mxu0 0
        %2382 = vmatpush1.bf16.msra.mxu0 0
        %2383 = vmatprep.subr.bf16.mxu0 0
        %2384 = vmatpush1.bf16.msra.mxu0 0
        %2385 = vmatprep.subr.bf16.mxu0 0
        %2386 = vmatpush1.bf16.msra.mxu0 0
        %2387 = vmatprep.subr.bf16.mxu0 0
        %2388 = vmatpush1.bf16.msra.mxu0 0
        %2389 = vmatprep.subr.bf16.mxu0 0
        %2390 = vmatpush1.bf16.msra.mxu0 0
        %2391 = vmatprep.subr.bf16.mxu0 0
        %2392 = vmatpush1.bf16.msra.mxu0 0
        %2393 = vmatprep.mubr.bf16.mxu0 0
        %2394 = vmatmul.mubr.bf16.gmra.mrb[0].mxu0 %v2308
        %v2395 = vpop.f32.mrb[0].mxu0
        %v2396 = vadd.f32 %v2312, %v2395
        %v2397 = vpop.f32.mrb[0].mxu0
        %v2398 = vpop.f32.mrb[0].mxu0
        %v2399 = vadd.f32 %v2312, %v2398
        %v2400 = vpop.f32.mrb[0].mxu0
        %2401 = vdwg.mxu0
        %v2402 = vadd.f32 %v2396, %v2241
        %v2403 = vadd.f32 %v2399, %v2242
        %v2404 = vsel %vm459, %v2402, 0.0
        %2405 = vadd.xlane.f32.xlu0 %v2404
        %v2406 = vpop.xlane.xlu0 %2405
        %v2407 = vsel %vm459, %v2403, 0.0
        %2408 = vadd.xlane.f32.xlu0 %v2407
        %v2409 = vpop.xlane.xlu0 %2408
        %v2410 = vmul.f32 %v2406, %v2210
        %v2411 = vmul.f32 %v2409, %v2210
        %v2412 = vsub.f32 %v2402, %v2410
        %v2413 = vsub.f32 %v2403, %v2411
        %v2414 = vmul.f32 %v2412, %v2412
        %v2415 = vmul.f32 %v2413, %v2413
        %v2416 = vsel %vm459, %v2414, 0.0
        %2417 = vadd.xlane.f32.xlu0 %v2416
        %v2418 = vpop.xlane.xlu0 %2417
        %v2419 = vsel %vm459, %v2415, 0.0
        %2420 = vadd.xlane.f32.xlu0 %v2419
        %v2421 = vpop.xlane.xlu0 %2420
        %v2422 = vmul.f32 %v2418, %v2210
        %v2423 = vmul.f32 %v2421, %v2210
        %v2424 = vadd.f32 %v2422, 1e-05
        %v2425 = vadd.f32 %v2423, 1e-05
        %v2426 = vrsqrt.pop %v2424
        %v2427 = vrsqrt.pop %v2425
        %v2428 = vmul.f32 %v2412, %v2426
        %v2429 = vmul.f32 %v2413, %v2427
        %v2430 = vlaneseq
        %v2431 = vshrl.u32 %v2430, 7
        %v2432 = vsub.s32 3, %v2431
        %v2433 = vrot.slane %v439, %v2432
        %v2434 = vmul.f32 %v2428, %v2433
        %v2435 = vmul.f32 %v2429, %v2433
        %v2436 = vlaneseq
        %v2437 = vshrl.u32 %v2436, 7
        %v2438 = vsub.s32 4, %v2437
        %v2439 = vrot.slane %v439, %v2438
        %v2440 = vadd.f32 %v2434, %v2439
        %v2441 = vadd.f32 %v2435, %v2439
        %2442 = vst.msk [vmem:[#allocation2] sm:$0xff] %vm459, %v2440
        %2443 = vst.msk [vmem:[#allocation2 + $0x8] sm:$0xff] %vm459, %v2441
        %p2444 = scmp.eq.s32.totalorder %s26, 1
        // Predicated region
        $region53: #{tpu_custom_call.1} parent=47 // pred_check
          %p2445 = pneg %p2444
        $region54: #{tpu_custom_call.1} parent=47 // pred_check_branch
          %2447 = sbr.rel (%p2445) target = $region56
        $region55: #{tpu_custom_call.1} parent=47 // pred_region
          %v2448 = vld [vmem:[#allocation2] sm:$0xff]
          %v2449 = vld [vmem:[#allocation2 + $0x8] sm:$0xff]
          %v2450 = vsel %vm459, %v2448, -inf
          %2451 = vmax.xlane.f32.xlu0 %v2450
          %v2452 = vpop.xlane.xlu0 %2451
          %v2453 = vsel %vm459, %v2449, -inf
          %2454 = vmax.xlane.f32.xlu0 %v2453
          %v2455 = vpop.xlane.xlu0 %2454
          %v2456 = vsub.f32 %v2448, %v2452
          %v2457 = vsub.f32 %v2449, %v2455
          %v2458 = vmul.f32 %v2456, 1.442695
          %v2459 = vpow.pop %v2458
          %v2460 = vmul.f32 %v2457, 1.442695
          %v2461 = vpow.pop %v2460
          %v2462 = vsel %vm459, %v2459, 0.0
          %2463 = vadd.xlane.f32.xlu0 %v2462
          %v2464 = vpop.xlane.xlu0 %2463
          %v2465 = vsel %vm459, %v2461, 0.0
          %2466 = vadd.xlane.f32.xlu0 %v2465
          %v2467 = vpop.xlane.xlu0 %2466
          %v2468 = vlog2.pop %v2464
          %v2469 = vmul.f32 %v2468, 0.6931472
          %v2470 = vlog2.pop %v2467
          %v2471 = vmul.f32 %v2470, 0.6931472
          %v2472 = vsub.f32 %v2456, %v2469
          %v2473 = vsub.f32 %v2457, %v2471
          %2474 = vst.msk [vmem:[%s367] sm:$0xff] %vm459, %v2472
          %2475 = vst.msk [vmem:[%s367 + $0x8] sm:$0xff] %vm459, %v2473
        $region56: #{tpu_custom_call.1} parent=47 // pred_fallthru
          _
        %s2476 = sand.u32 %s223, 1
        %s2477 = scalar_lea.sflag [#allocation4], %s2476
        %s2478 = sand.u32 %s223, 1
        %s2479 = smul.addr %s2478, 16
        %s2480 = scalar_lea.vmem [#allocation3], %s2479
        // Predicated region
        $region57: #{tpu_custom_call.1} parent=47 // pred_check
          %p2481 = pneg %p233
        $region58: #{tpu_custom_call.1} parent=47 // pred_check_branch
          %2483 = sbr.rel (%p2481) target = $region60
        $region59: #{tpu_custom_call.1} parent=47 // pred_region
          %s2485 = ssub.s32 256, 256
          %2486 = vsyncadd %s2477, %s2485
          %s2487 = smul.addr %s25, 2
          %s2488 = smul.addr %s2487, 128
          %s2489 = scalar_lea.hbm %s7, %s2488
          %s2490 = sshll.u32 %s2480, 4
          %s2491 = int_to_ptr.vmem [resolvable:$true] %s2490
          %2496 = dma.vmem_to_hbm [thread:$0]  %s2491, 256, %s2489, %s2477, 128, 128, 8
        $region60: #{tpu_custom_call.1} parent=47 // pred_fallthru
          _
      $region48: #{tpu_custom_call.1} parent=5 // pred_fallthru
        _
      %p2497 = scmp.le.s32.totalorder 2, %s16
      // Predicated region
      $region61: #{tpu_custom_call.1} parent=5 // pred_check
        %p2498 = pneg %p2497
      $region62: #{tpu_custom_call.1} parent=5 // pred_check_branch
        %2500 = sbr.rel (%p2498) target = $region64
      $region63: #{tpu_custom_call.1} parent=5 // pred_region
        %s2501 = ssub.s32 %s16, 2
        // Predicated region
        $region65: #{tpu_custom_call.1} parent=63 // pred_check
          %p2502 = pneg %p239
        $region66: #{tpu_custom_call.1} parent=63 // pred_check_branch
          %2504 = sbr.rel (%p2502) target = $region68
        $region67: #{tpu_custom_call.1} parent=63 // pred_region
          %s2505 = sand.u32 %s224, 1
          %s2506 = scalar_lea.sflag [#allocation4], %s2505
          %s2507 = sand.u32 %s224, 1
          %s2508 = smul.addr %s2507, 16
          %s2509 = scalar_lea.vmem [#allocation3], %s2508
          %2510 = dma.done %s2506, 256
        $region68: #{tpu_custom_call.1} parent=63 // pred_fallthru
          _
      $region64: #{tpu_custom_call.1} parent=5 // pred_fallthru
        _
    $region6: #{tpu_custom_call.1} parent=1 // loop_footer
      %s20 = sadd.s32 1, %s16
    $region7: #{tpu_custom_call.1} parent=1 // loop_footer_branch
      %15 = sbr.rel target = $region3
    $region8: #{tpu_custom_call.1} parent=1 // loop_exit
      _
    %2511 = vsyncpa [#allocation4], 1
    %s2512 = scalar_lea.sflag [#allocation4], 1
    %2513 = vsyncpa %s2512, 1

</llo_original>
